<compile_context>
chip_gen: v5e
topology: v5e:2x2
jax: 0.10.0
libtpu: 0.0.40
codegen_flags: <defaults>
</compile_context>

<pallas_src>
import jax
import jax.numpy as jnp
from jax.experimental import pallas as pl
from jax.experimental.pallas import tpu as pltpu


def mlp_kernel(x_ref, w1_ref, b1_ref, w2_ref, b2_ref, w3_ref, b3_ref, o_ref):
    # x tile arrives in its native [tile_b, D] f32 layout; transpose + cast in-kernel
    # (XLU + VPU are otherwise idle) so the MXU sees batch on the lane axis.
    xT = x_ref[...].T.astype(jnp.bfloat16)                     # (D, tile_b) bf16
    # fc1: (H1, D) @ (D, tile_b) -> (H1, tile_b), f32 accumulation on the MXU.
    h1 = jnp.dot(w1_ref[...], xT, preferred_element_type=jnp.float32)
    # bias + ReLU in f32, then store the big temporary as bf16 (halves vst traffic).
    h1 = jnp.maximum(h1 + b1_ref[...], 0.0).astype(jnp.bfloat16)
    # fc2: (H2, H1) @ (H1, tile_b) -> (H2, tile_b)
    h2 = jnp.dot(w2_ref[...], h1, preferred_element_type=jnp.float32)
    h2 = jnp.maximum(h2 + b2_ref[...], 0.0)
    # fc3 (out_features == 1): VPU multiply + sublane reduce instead of an N=1 matmul.
    z = jnp.sum(h2 * w3_ref[...], axis=0, keepdims=True) + b3_ref[...]   # (1, tile_b)
    # Numerically-stable sigmoid; exp on the EUP, approx reciprocal on the EUP slot.
    ez = jnp.exp(-jnp.abs(z))
    r = pl.reciprocal(1.0 + ez, approx=True)
    o_ref[...] = jnp.where(z >= 0.0, r, ez * r).astype(o_ref.dtype)


def _round_up(v, m):
    return ((v + m - 1) // m) * m


def _mlp_jnp(x, params):
    """Plain-XLA path for small batches (module-exact f32 math)."""
    w1, b1, w2, b2, w3, b3 = params
    h1 = jnp.maximum(x @ w1.T + b1, 0.0)
    h2 = jnp.maximum(h1 @ w2.T + b2, 0.0)
    return jax.nn.sigmoid(h2 @ w3.T + b3)


def anomaly_classifier(x, params, *, tile_b=None, small_batch_threshold=1024):
    """x: [B, input_dim] float32 -> [B, 1] float32.

    params in torch nn.Linear layout: w_k [out, in], b_k [out].
    Small batches (B < small_batch_threshold, no explicit tile_b) use a fused jnp path;
    pass an explicit tile_b to force the Pallas kernel.
    """
    w1, b1, w2, b2, w3, b3 = params
    B, D = x.shape
    H1 = w1.shape[0]   # 64
    H2 = w2.shape[0]   # 32

    if tile_b is None and B < small_batch_threshold:
        # Fixed pallas_call dispatch cost dominates at small B; XLA fuses this tiny MLP fine.
        return _mlp_jnp(x, params)

    if tile_b is None:
        # Largest multiple of 512 in [512, 8192] that still leaves >= 2 grid steps:
        # amortizes per-step overhead and keeps both v7x TensorCores busy.
        tile_b = min(8192, _round_up(-(-B // 2), 512))
    if tile_b >= B:
        tile_b = _round_up(B, 128)        # single lane-aligned step
    else:
        tile_b = _round_up(tile_b, 128)   # lane/sublane divisibility of the BlockSpecs

    n_tiles = pl.cdiv(B, tile_b)
    Bp = n_tiles * tile_b
    if Bp != B:
        x = jnp.pad(x, ((0, Bp - B), (0, 0)))   # only for ragged batches

    # Weight/bias layouts: bf16 MXU operands, f32 epilogue constants (broadcast over lanes).
    w1b = w1.astype(jnp.bfloat16)                       # (H1, D)
    w2b = w2.astype(jnp.bfloat16)                       # (H2, H1)
    b1c = b1.reshape(H1, 1).astype(jnp.float32)
    b2c = b2.reshape(H2, 1).astype(jnp.float32)
    w3c = w3.reshape(H2, 1).astype(jnp.float32)         # fc3 row as a column (f32, off-MXU)
    b3c = b3.reshape(1, 1).astype(jnp.float32)

    fixed = lambda i: (0, 0)                            # weights/biases stay VMEM-resident

    out = pl.pallas_call(
        mlp_kernel,
        out_shape=jax.ShapeDtypeStruct((1, Bp), jnp.float32),
        grid=(n_tiles,),
        in_specs=[
            pl.BlockSpec((tile_b, D), lambda i: (i, 0)),   # x streamed natively [B, D]
            pl.BlockSpec((H1, D), fixed),                  # W1
            pl.BlockSpec((H1, 1), fixed),                  # b1
            pl.BlockSpec((H2, H1), fixed),                 # W2
            pl.BlockSpec((H2, 1), fixed),                  # b2
            pl.BlockSpec((H2, 1), fixed),                  # w3 (as column)
            pl.BlockSpec((1, 1), fixed),                   # b3
        ],
        out_specs=pl.BlockSpec((1, tile_b), lambda i: (0, i)),  # lane-dense output
        compiler_params=pltpu.CompilerParams(
            dimension_semantics=("parallel",)),
    )(x, w1b, b1c, w2b, b2c, w3c, b3c)

    return out[0, :B].reshape(B, 1)


def init_params(key, input_dim):
    """Deterministic init matching nn.Linear shapes (torch layout: w [out, in], b [out])."""
    ks = jax.random.split(key, 6)

    def linear(kw, kb, fan_in, fan_out):
        bound = 1.0 / jnp.sqrt(fan_in)
        w = jax.random.uniform(kw, (fan_out, fan_in), jnp.float32, -bound, bound)
        b = jax.random.uniform(kb, (fan_out,), jnp.float32, -bound, bound)
        return w, b

    w1, b1 = linear(ks[0], ks[1], input_dim, 64)
    w2, b2 = linear(ks[2], ks[3], 64, 32)
    w3, b3 = linear(ks[4], ks[5], 32, 1)
    return (w1, b1, w2, b2, w3, b3)


def reference_f32(x, params):
    """Pure-f32 reference (module semantics)."""
    w1, b1, w2, b2, w3, b3 = params
    h1 = jnp.maximum(x @ w1.T + b1, 0.0)
    h2 = jnp.maximum(h1 @ w2.T + b2, 0.0)
    return jax.nn.sigmoid(h2 @ w3.T + b3)


def reference_matched(x, params):
    """Mirrors the kernel's bf16-input / f32-accumulate math."""
    w1, b1, w2, b2, w3, b3 = params
    bf = jnp.bfloat16
    h1 = jnp.dot(x.astype(bf), w1.astype(bf).T, preferred_element_type=jnp.float32) + b1
    h1 = jnp.maximum(h1, 0.0)
    h2 = jnp.dot(h1.astype(bf), w2.astype(bf).T, preferred_element_type=jnp.float32) + b2
    h2 = jnp.maximum(h2, 0.0)
    return jax.nn.sigmoid(h2 @ w3.T + b3)


if __name__ == "__main__":
    key = jax.random.PRNGKey(0)
    k_x1, k_x2, k_x3, k_p = jax.random.split(key, 4)

    input_dim = 32
    params = init_params(k_p, input_dim)

    # Case 1: kernel path, aligned batch -> auto tile_b=1024, 2 "parallel" grid steps.
    x1 = jax.random.normal(k_x1, (2048, input_dim), jnp.float32)
    out1 = jax.block_until_ready(anomaly_classifier(x1, params))
    assert out1.shape == (2048, 1), out1.shape
    ref1_m = reference_matched(x1, params)
    ref1_f = reference_f32(x1, params)
    assert jnp.allclose(out1, ref1_m, atol=5e-3, rtol=5e-3), float(jnp.max(jnp.abs(out1 - ref1_m)))
    assert jnp.allclose(out1, ref1_f, atol=1e-1, rtol=1e-1), float(jnp.max(jnp.abs(out1 - ref1_f)))

    # Case 2: kernel path forced via explicit tile_b, ragged batch (zero-pad to 2x512).
    x2 = jax.random.normal(k_x2, (1000, input_dim), jnp.float32)
    out2 = jax.block_until_ready(anomaly_classifier(x2, params, tile_b=512))
    assert out2.shape == (1000, 1), out2.shape
    ref2_m = reference_matched(x2, params)
    assert jnp.allclose(out2, ref2_m, atol=5e-3, rtol=5e-3), float(jnp.max(jnp.abs(out2 - ref2_m)))

    # Case 3: small batch -> jnp bypass (no kernel launch, exact f32 math).
    x3 = jax.random.normal(k_x3, (16, input_dim), jnp.float32)
    out3 = jax.block_until_ready(anomaly_classifier(x3, params))
    assert out3.shape == (16, 1), out3.shape
    ref3_f = reference_f32(x3, params)
    assert jnp.allclose(out3, ref3_f, atol=1e-5, rtol=1e-5), float(jnp.max(jnp.abs(out3 - ref3_f)))

    print("KERNEL_OK")
</pallas_src>

<mosaic_0001>
module attributes {stable_mosaic.version = 11 : i64} {
  func.func @mlp_kernel(%arg0: i32, %arg1: memref<1024x32xf32, #tpu.memory_space<vmem>>, %arg2: memref<64x32xbf16, #tpu.memory_space<vmem>>, %arg3: memref<64x1xf32, #tpu.memory_space<vmem>>, %arg4: memref<32x64xbf16, #tpu.memory_space<vmem>>, %arg5: memref<32x1xf32, #tpu.memory_space<vmem>>, %arg6: memref<32x1xf32, #tpu.memory_space<vmem>>, %arg7: memref<1x1xf32, #tpu.memory_space<vmem>>, %arg8: memref<1x1024xf32, #tpu.memory_space<vmem>>) attributes {dimension_semantics = [#tpu.dimension_semantics<parallel>], iteration_bounds = array<i64: 2>, scalar_prefetch = 0 : i64, scratch_operands = 0 : i64, tpu.core_type = #tpu.core_type<tc>, window_params = [{transform_indices = @transform_0, window_bounds = array<i64: 1024, 32>}, {pipeline_mode = #tpu.pipeline_mode<synchronous>, transform_indices = @transform_1, window_bounds = array<i64: 64, 32>}, {pipeline_mode = #tpu.pipeline_mode<synchronous>, transform_indices = @transform_2, window_bounds = array<i64: 64, 1>}, {pipeline_mode = #tpu.pipeline_mode<synchronous>, transform_indices = @transform_3, window_bounds = array<i64: 32, 64>}, {pipeline_mode = #tpu.pipeline_mode<synchronous>, transform_indices = @transform_4, window_bounds = array<i64: 32, 1>}, {pipeline_mode = #tpu.pipeline_mode<synchronous>, transform_indices = @transform_5, window_bounds = array<i64: 32, 1>}, {pipeline_mode = #tpu.pipeline_mode<synchronous>, transform_indices = @transform_6, window_bounds = array<i64: 1, 1>}, {transform_indices = @transform_7, window_bounds = array<i64: 1, 1024>}]} {
    %c0 = arith.constant 0 : index
    %c0_0 = arith.constant 0 : index
    %0 = vector.load %arg1[%c0, %c0_0] : memref<1024x32xf32, #tpu.memory_space<vmem>>, vector<1024x32xf32>
    %1 = tpu.transpose %0, [1, 0] : vector<1024x32xf32> -> vector<32x1024xf32>
    %2 = arith.truncf %1 : vector<32x1024xf32> to vector<32x1024xbf16>
    %c0_1 = arith.constant 0 : index
    %c0_2 = arith.constant 0 : index
    %3 = vector.load %arg2[%c0_1, %c0_2] : memref<64x32xbf16, #tpu.memory_space<vmem>>, vector<64x32xbf16>
    %cst = arith.constant dense<0.000000e+00> : vector<64x1024xf32>
    %4 = tpu.matmul %3, %2, %cst {dimension_numbers = #tpu.dot_dimension_numbers<[1], [0], [0], [1], [0, 0, 1, 1], [], []>} : vector<64x32xbf16>, vector<32x1024xbf16>, vector<64x1024xf32> -> vector<64x1024xf32>
    %c0_3 = arith.constant 0 : index
    %c0_4 = arith.constant 0 : index
    %5 = vector.load %arg3[%c0_3, %c0_4] : memref<64x1xf32, #tpu.memory_space<vmem>>, vector<64x1xf32>
    %6 = vector.broadcast %5 : vector<64x1xf32> to vector<64x1024xf32>
    %7 = arith.addf %4, %6 : vector<64x1024xf32>
    %cst_5 = arith.constant 0.000000e+00 : f32
    %8 = vector.broadcast %cst_5 : f32 to vector<64x1024xf32>
    %9 = arith.maximumf %7, %8 : vector<64x1024xf32>
    %10 = arith.truncf %9 : vector<64x1024xf32> to vector<64x1024xbf16>
    %c0_6 = arith.constant 0 : index
    %c0_7 = arith.constant 0 : index
    %11 = vector.load %arg4[%c0_6, %c0_7] : memref<32x64xbf16, #tpu.memory_space<vmem>>, vector<32x64xbf16>
    %cst_8 = arith.constant dense<0.000000e+00> : vector<32x1024xf32>
    %12 = tpu.matmul %11, %10, %cst_8 {dimension_numbers = #tpu.dot_dimension_numbers<[1], [0], [0], [1], [0, 0, 1, 1], [], []>} : vector<32x64xbf16>, vector<64x1024xbf16>, vector<32x1024xf32> -> vector<32x1024xf32>
    %c0_9 = arith.constant 0 : index
    %c0_10 = arith.constant 0 : index
    %13 = vector.load %arg5[%c0_9, %c0_10] : memref<32x1xf32, #tpu.memory_space<vmem>>, vector<32x1xf32>
    %14 = vector.broadcast %13 : vector<32x1xf32> to vector<32x1024xf32>
    %15 = arith.addf %12, %14 : vector<32x1024xf32>
    %cst_11 = arith.constant 0.000000e+00 : f32
    %16 = vector.broadcast %cst_11 : f32 to vector<32x1024xf32>
    %17 = arith.maximumf %15, %16 : vector<32x1024xf32>
    %c0_12 = arith.constant 0 : index
    %c0_13 = arith.constant 0 : index
    %18 = vector.load %arg6[%c0_12, %c0_13] : memref<32x1xf32, #tpu.memory_space<vmem>>, vector<32x1xf32>
    %19 = vector.broadcast %18 : vector<32x1xf32> to vector<32x1024xf32>
    %20 = arith.mulf %17, %19 : vector<32x1024xf32>
    %cst_14 = arith.constant dense<0.000000e+00> : vector<1024xf32>
    %21 = vector.multi_reduction <add>, %20, %cst_14 [0] : vector<32x1024xf32> to vector<1024xf32>
    %22 = vector.shape_cast %21 : vector<1024xf32> to vector<1x1024xf32>
    %c0_15 = arith.constant 0 : index
    %c0_16 = arith.constant 0 : index
    %23 = vector.load %arg7[%c0_15, %c0_16] : memref<1x1xf32, #tpu.memory_space<vmem>>, vector<1x1xf32>
    %24 = vector.broadcast %23 : vector<1x1xf32> to vector<1x1024xf32>
    %25 = arith.addf %22, %24 : vector<1x1024xf32>
    %26 = math.absf %25 : vector<1x1024xf32>
    %cst_17 = arith.constant 0.000000e+00 : f32
    %27 = vector.broadcast %cst_17 : f32 to vector<1x1024xf32>
    %28 = arith.subf %27, %26 : vector<1x1024xf32>
    %29 = math.exp %28 : vector<1x1024xf32>
    %cst_18 = arith.constant 1.000000e+00 : f32
    %30 = vector.broadcast %cst_18 : f32 to vector<1x1024xf32>
    %31 = arith.addf %30, %29 : vector<1x1024xf32>
    %32 = tpu.reciprocal %31 {approx = true} : vector<1x1024xf32> -> vector<1x1024xf32>
    %cst_19 = arith.constant 0.000000e+00 : f32
    %33 = vector.broadcast %cst_19 : f32 to vector<1x1024xf32>
    %34 = arith.cmpf oge, %25, %33 : vector<1x1024xf32>
    %35 = arith.mulf %29, %32 : vector<1x1024xf32>
    %36 = arith.select %34, %32, %35 : vector<1x1024xi1>, vector<1x1024xf32>
    %c0_20 = arith.constant 0 : index
    %c0_21 = arith.constant 0 : index
    %37 = vector.load %arg8[%c0_20, %c0_21] : memref<1x1024xf32, #tpu.memory_space<vmem>>, vector<1x1024xf32>
    tpu.vector_store %arg8[%c0_20, %c0_21], %36 {strides = array<i32>} : memref<1x1024xf32, #tpu.memory_space<vmem>>, vector<1x1024xf32>,
    return
  }
  func.func @transform_0(%arg0: i32) -> (i32, i32) {
    %c0_i32 = arith.constant 0 : i32
    %c0_i32_0 = arith.constant 0 : i32
    return %arg0, %c0_i32 : i32, i32
  }
  func.func @transform_1(%arg0: i32) -> (i32, i32) {
    %c0_i32 = arith.constant 0 : i32
    %c0_i32_0 = arith.constant 0 : i32
    %c0_i32_1 = arith.constant 0 : i32
    return %c0_i32, %c0_i32_0 : i32, i32
  }
  func.func @transform_2(%arg0: i32) -> (i32, i32) {
    %c0_i32 = arith.constant 0 : i32
    %c0_i32_0 = arith.constant 0 : i32
    %c0_i32_1 = arith.constant 0 : i32
    return %c0_i32, %c0_i32_0 : i32, i32
  }
  func.func @transform_3(%arg0: i32) -> (i32, i32) {
    %c0_i32 = arith.constant 0 : i32
    %c0_i32_0 = arith.constant 0 : i32
    %c0_i32_1 = arith.constant 0 : i32
    return %c0_i32, %c0_i32_0 : i32, i32
  }
  func.func @transform_4(%arg0: i32) -> (i32, i32) {
    %c0_i32 = arith.constant 0 : i32
    %c0_i32_0 = arith.constant 0 : i32
    %c0_i32_1 = arith.constant 0 : i32
    return %c0_i32, %c0_i32_0 : i32, i32
  }
  func.func @transform_5(%arg0: i32) -> (i32, i32) {
    %c0_i32 = arith.constant 0 : i32
    %c0_i32_0 = arith.constant 0 : i32
    %c0_i32_1 = arith.constant 0 : i32
    return %c0_i32, %c0_i32_0 : i32, i32
  }
  func.func @transform_6(%arg0: i32) -> (i32, i32) {
    %c0_i32 = arith.constant 0 : i32
    %c0_i32_0 = arith.constant 0 : i32
    %c0_i32_1 = arith.constant 0 : i32
    return %c0_i32, %c0_i32_0 : i32, i32
  }
  func.func @transform_7(%arg0: i32) -> (i32, i32) {
    %c0_i32 = arith.constant 0 : i32
    %c0_i32_0 = arith.constant 0 : i32
    return %c0_i32, %arg0 : i32, i32
  }
}

</mosaic_0001>

<llo_original>
// kernel: tpu_custom_call.1
$region0: #{tpu_custom_call.1}
  #allocation0 [shape = 'u32[]', space=smem, size = 0x4, offset = 0x4, fixed_abs, tag = 'smem constant byte address 0x4 - core index']
  #allocation1 [shape = 'u32[72,128]{1,0:T(1,128)}', space=vmem, size = 0x9000, scoped, tag = 'internal scratch']
  #allocation2 [shape = 'f32[1,1]{1,0:T(1,128)S(1)}', space=vmem, size = 0x200, scoped, tag = 'scoped memory for tpu_custom_call.1']
  %s0 = inlined_call_operand.vmem [shape: f32[2048,32], index: 0, kind: input, shape index: {}]
  %s1 = inlined_call_operand.vmem [shape: bf16[64,32], index: 1, kind: input, shape index: {}]
  %s2 = inlined_call_operand.vmem [shape: f32[64,1], index: 2, kind: input, shape index: {}]
  %s3 = inlined_call_operand.vmem [shape: bf16[32,64], index: 3, kind: input, shape index: {}]
  %s4 = inlined_call_operand.vmem [shape: f32[32,1], index: 4, kind: input, shape index: {}]
  %s5 = inlined_call_operand.vmem [shape: f32[32,1], index: 5, kind: input, shape index: {}]
  %s6 = inlined_call_operand.<no memory space> [shape: f32[1,1], index: 6, kind: input, shape index: {}]
  %s7 = inlined_call_operand.hbm [shape: f32[1,2048], index: 7, kind: output, shape index: {}]
  %s8 = sld [smem:[#allocation0]]
  $region61: #{tpu_custom_call.1} parent=0
    _
  %s10 = ssub.s32 1, %s8
  %s11 = scalar_select 0, %s10, %s8
  %v12 = vstv %s6
  %13 = vst [vmem:[#allocation2] sm:$0x1] %v12
  $region1: #{tpu_custom_call.1} parent=0
    #allocation3 [shape = 'u8[8192]{0}', space=vmem, size = 0x2000, scoped, tag = 'output window, operand 0']
    #allocation4 [shape = 's32[2]{0}', space=sflag, size = 0x8, scoped, tag = 'scoped memory for tpu_custom_call.1']
    %14 = vsyncpa [#allocation4], 0
    %s15 = scalar_lea.sflag [#allocation4], 1
    %16 = vsyncpa %s15, 0
    loop: start=0, step=1, limit=4
    $region2: #{tpu_custom_call.1} parent=1 // loop_pre_header
      _
    $region3: #{tpu_custom_call.1} parent=1 // loop_header
      %s18 = sphi 0, %s22
      %p19 = scmp.ge.s32.totalorder %s18, 4
      %s28 = sphi 0, %s30
      %s31 = sphi 0, %s28
      %s32 = sphi 0, %s31
      %s48 = sphi 0, %s32
      %s52 = sphi 0, %s52
      %s54 = sphi 0, %s52
      %s55 = sphi 0, %s54
      %s69 = sphi 0, %s55
      %s73 = sphi 0, %s73
      %s75 = sphi 0, %s73
      %s76 = sphi 0, %s75
      %s90 = sphi 0, %s76
      %s94 = sphi 0, %s94
      %s96 = sphi 0, %s94
      %s97 = sphi 0, %s96
      %s111 = sphi 0, %s97
      %s115 = sphi 0, %s115
      %s117 = sphi 0, %s115
      %s118 = sphi 0, %s117
      %s132 = sphi 0, %s118
      %s136 = sphi 0, %s136
      %s138 = sphi 0, %s136
      %s139 = sphi 0, %s138
      %s153 = sphi 0, %s139
      %s157 = sphi 0, %s157
      %s159 = sphi 0, %s157
      %s160 = sphi 0, %s159
      %s174 = sphi 0, %s160
      %s180 = sphi 0, %s182
      %s183 = sphi 0, %s180
      %s184 = sphi 0, %s183
      %s200 = sphi 0, %s184
    $region4: #{tpu_custom_call.1} parent=1 // loop_header_branch
      %21 = sbr.rel (%p19) target = $region8
    $region5: #{tpu_custom_call.1} parent=1 // loop_body
      %s23 = ssub.s32 %s18, 1
      %s24 = ssub.s32 %s18, 2
      %s25 = sadd.s32 %s18, 1
      %s26 = ssub.s32 %s18, %s25
      %p27 = scmp.eq.s32.totalorder %s26, 0
      %s29 = sadd.s32 %s28, 1
      %s30 = scalar_select %p27, %s28, %s29
      %p33 = pneg %p27
      %p34 = scmp.eq.s32.totalorder %s18, 1
      %p35 = por %p33, %p34
      %p36 = scmp.ne.s32.totalorder %s28, %s31
      %p37 = scmp.eq.s32.totalorder %s18, 0
      %p38 = por %p36, %p37
      %p39 = scmp.ne.s32.totalorder %s28, %s31
      %p40 = scmp.eq.s32.totalorder %s23, 1
      %p41 = por %p39, %p40
      %p42 = scmp.ne.s32.totalorder %s31, %s32
      %p43 = scmp.eq.s32.totalorder %s23, 0
      %p44 = por %p42, %p43
      %p45 = scmp.ne.s32.totalorder %s31, %s32
      %p46 = scmp.eq.s32.totalorder %s24, 1
      %p47 = por %p45, %p46
      %p49 = scmp.ne.s32.totalorder %s32, %s48
      %p50 = scmp.eq.s32.totalorder %s24, 0
      %p51 = por %p49, %p50
      %s53 = sadd.s32 %s52, 1
      %p56 = scmp.eq.s32.totalorder %s18, 1
      %p57 = scmp.ne.s32.totalorder %s52, %s54
      %p58 = scmp.eq.s32.totalorder %s18, 0
      %p59 = por %p57, %p58
      %p60 = scmp.ne.s32.totalorder %s52, %s54
      %p61 = scmp.eq.s32.totalorder %s23, 1
      %p62 = por %p60, %p61
      %p63 = scmp.ne.s32.totalorder %s54, %s55
      %p64 = scmp.eq.s32.totalorder %s23, 0
      %p65 = por %p63, %p64
      %p66 = scmp.ne.s32.totalorder %s54, %s55
      %p67 = scmp.eq.s32.totalorder %s24, 1
      %p68 = por %p66, %p67
      %p70 = scmp.ne.s32.totalorder %s55, %s69
      %p71 = scmp.eq.s32.totalorder %s24, 0
      %p72 = por %p70, %p71
      %s74 = sadd.s32 %s73, 1
      %p77 = scmp.eq.s32.totalorder %s18, 1
      %p78 = scmp.ne.s32.totalorder %s73, %s75
      %p79 = scmp.eq.s32.totalorder %s18, 0
      %p80 = por %p78, %p79
      %p81 = scmp.ne.s32.totalorder %s73, %s75
      %p82 = scmp.eq.s32.totalorder %s23, 1
      %p83 = por %p81, %p82
      %p84 = scmp.ne.s32.totalorder %s75, %s76
      %p85 = scmp.eq.s32.totalorder %s23, 0
      %p86 = por %p84, %p85
      %p87 = scmp.ne.s32.totalorder %s75, %s76
      %p88 = scmp.eq.s32.totalorder %s24, 1
      %p89 = por %p87, %p88
      %p91 = scmp.ne.s32.totalorder %s76, %s90
      %p92 = scmp.eq.s32.totalorder %s24, 0
      %p93 = por %p91, %p92
      %s95 = sadd.s32 %s94, 1
      %p98 = scmp.eq.s32.totalorder %s18, 1
      %p99 = scmp.ne.s32.totalorder %s94, %s96
      %p100 = scmp.eq.s32.totalorder %s18, 0
      %p101 = por %p99, %p100
      %p102 = scmp.ne.s32.totalorder %s94, %s96
      %p103 = scmp.eq.s32.totalorder %s23, 1
      %p104 = por %p102, %p103
      %p105 = scmp.ne.s32.totalorder %s96, %s97
      %p106 = scmp.eq.s32.totalorder %s23, 0
      %p107 = por %p105, %p106
      %p108 = scmp.ne.s32.totalorder %s96, %s97
      %p109 = scmp.eq.s32.totalorder %s24, 1
      %p110 = por %p108, %p109
      %p112 = scmp.ne.s32.totalorder %s97, %s111
      %p113 = scmp.eq.s32.totalorder %s24, 0
      %p114 = por %p112, %p113
      %s116 = sadd.s32 %s115, 1
      %p119 = scmp.eq.s32.totalorder %s18, 1
      %p120 = scmp.ne.s32.totalorder %s115, %s117
      %p121 = scmp.eq.s32.totalorder %s18, 0
      %p122 = por %p120, %p121
      %p123 = scmp.ne.s32.totalorder %s115, %s117
      %p124 = scmp.eq.s32.totalorder %s23, 1
      %p125 = por %p123, %p124
      %p126 = scmp.ne.s32.totalorder %s117, %s118
      %p127 = scmp.eq.s32.totalorder %s23, 0
      %p128 = por %p126, %p127
      %p129 = scmp.ne.s32.totalorder %s117, %s118
      %p130 = scmp.eq.s32.totalorder %s24, 1
      %p131 = por %p129, %p130
      %p133 = scmp.ne.s32.totalorder %s118, %s132
      %p134 = scmp.eq.s32.totalorder %s24, 0
      %p135 = por %p133, %p134
      %s137 = sadd.s32 %s136, 1
      %p140 = scmp.eq.s32.totalorder %s18, 1
      %p141 = scmp.ne.s32.totalorder %s136, %s138
      %p142 = scmp.eq.s32.totalorder %s18, 0
      %p143 = por %p141, %p142
      %p144 = scmp.ne.s32.totalorder %s136, %s138
      %p145 = scmp.eq.s32.totalorder %s23, 1
      %p146 = por %p144, %p145
      %p147 = scmp.ne.s32.totalorder %s138, %s139
      %p148 = scmp.eq.s32.totalorder %s23, 0
      %p149 = por %p147, %p148
      %p150 = scmp.ne.s32.totalorder %s138, %s139
      %p151 = scmp.eq.s32.totalorder %s24, 1
      %p152 = por %p150, %p151
      %p154 = scmp.ne.s32.totalorder %s139, %s153
      %p155 = scmp.eq.s32.totalorder %s24, 0
      %p156 = por %p154, %p155
      %s158 = sadd.s32 %s157, 1
      %p161 = scmp.eq.s32.totalorder %s18, 1
      %p162 = scmp.ne.s32.totalorder %s157, %s159
      %p163 = scmp.eq.s32.totalorder %s18, 0
      %p164 = por %p162, %p163
      %p165 = scmp.ne.s32.totalorder %s157, %s159
      %p166 = scmp.eq.s32.totalorder %s23, 1
      %p167 = por %p165, %p166
      %p168 = scmp.ne.s32.totalorder %s159, %s160
      %p169 = scmp.eq.s32.totalorder %s23, 0
      %p170 = por %p168, %p169
      %p171 = scmp.ne.s32.totalorder %s159, %s160
      %p172 = scmp.eq.s32.totalorder %s24, 1
      %p173 = por %p171, %p172
      %p175 = scmp.ne.s32.totalorder %s160, %s174
      %p176 = scmp.eq.s32.totalorder %s24, 0
      %p177 = por %p175, %p176
      %s178 = ssub.s32 %s18, %s25
      %p179 = scmp.eq.s32.totalorder %s178, 0
      %s181 = sadd.s32 %s180, 1
      %s182 = scalar_select %p179, %s180, %s181
      %p185 = pneg %p179
      %p186 = scmp.eq.s32.totalorder %s18, 1
      %p187 = por %p185, %p186
      %p188 = scmp.ne.s32.totalorder %s180, %s183
      %p189 = scmp.eq.s32.totalorder %s18, 0
      %p190 = por %p188, %p189
      %p191 = scmp.ne.s32.totalorder %s180, %s183
      %p192 = scmp.eq.s32.totalorder %s23, 1
      %p193 = por %p191, %p192
      %p194 = scmp.ne.s32.totalorder %s183, %s184
      %p195 = scmp.eq.s32.totalorder %s23, 0
      %p196 = por %p194, %p195
      %p197 = scmp.ne.s32.totalorder %s183, %s184
      %p198 = scmp.eq.s32.totalorder %s24, 1
      %p199 = por %p197, %p198
      %p201 = scmp.ne.s32.totalorder %s184, %s200
      %p202 = scmp.eq.s32.totalorder %s24, 0
      %p203 = por %p201, %p202
      %p204 = scmp.le.s32.totalorder 1, %s18
      %p205 = scmp.lt.s32.totalorder %s18, 3
      %p206 = pnand %p204, %p205
      %p207 = pneg %p206
      // Predicated region
      $region9: #{tpu_custom_call.1} parent=5 // pred_check
        _
      $region10: #{tpu_custom_call.1} parent=5 // pred_check_branch
        %209 = sbr.rel (%p206) target = $region12
      $region11: #{tpu_custom_call.1} parent=5 // pred_region
        %s210 = ssub.s32 %s18, 1
        // Predicated region
        $region13: #{tpu_custom_call.1} parent=11 // pred_check
          %p211 = pneg %p65
        $region14: #{tpu_custom_call.1} parent=11 // pred_check_branch
          %213 = sbr.rel (%p211) target = $region16
        $region15: #{tpu_custom_call.1} parent=11 // pred_region
          _
        $region16: #{tpu_custom_call.1} parent=11 // pred_fallthru
          _
        // Predicated region
        $region17: #{tpu_custom_call.1} parent=11 // pred_check
          %p214 = pneg %p86
        $region18: #{tpu_custom_call.1} parent=11 // pred_check_branch
          %216 = sbr.rel (%p214) target = $region20
        $region19: #{tpu_custom_call.1} parent=11 // pred_region
          _
        $region20: #{tpu_custom_call.1} parent=11 // pred_fallthru
          _
        // Predicated region
        $region21: #{tpu_custom_call.1} parent=11 // pred_check
          %p217 = pneg %p107
        $region22: #{tpu_custom_call.1} parent=11 // pred_check_branch
          %219 = sbr.rel (%p217) target = $region24
        $region23: #{tpu_custom_call.1} parent=11 // pred_region
          _
        $region24: #{tpu_custom_call.1} parent=11 // pred_fallthru
          _
        // Predicated region
        $region25: #{tpu_custom_call.1} parent=11 // pred_check
          %p220 = pneg %p128
        $region26: #{tpu_custom_call.1} parent=11 // pred_check_branch
          %222 = sbr.rel (%p220) target = $region28
        $region27: #{tpu_custom_call.1} parent=11 // pred_region
          _
        $region28: #{tpu_custom_call.1} parent=11 // pred_fallthru
          _
        // Predicated region
        $region29: #{tpu_custom_call.1} parent=11 // pred_check
          %p223 = pneg %p149
        $region30: #{tpu_custom_call.1} parent=11 // pred_check_branch
          %225 = sbr.rel (%p223) target = $region32
        $region31: #{tpu_custom_call.1} parent=11 // pred_region
          _
        $region32: #{tpu_custom_call.1} parent=11 // pred_fallthru
          _
        // Predicated region
        $region33: #{tpu_custom_call.1} parent=11 // pred_check
          %p226 = pneg %p170
        $region34: #{tpu_custom_call.1} parent=11 // pred_check_branch
          %228 = sbr.rel (%p226) target = $region36
        $region35: #{tpu_custom_call.1} parent=11 // pred_region
          _
        $region36: #{tpu_custom_call.1} parent=11 // pred_fallthru
          _
      $region12: #{tpu_custom_call.1} parent=5 // pred_fallthru
        _
      %p229 = scmp.lt.s32.totalorder %s18, 2
      // Predicated region
      $region37: #{tpu_custom_call.1} parent=5 // pred_check
        %p230 = pneg %p229
      $region38: #{tpu_custom_call.1} parent=5 // pred_check_branch
        %232 = sbr.rel (%p230) target = $region40
      $region39: #{tpu_custom_call.1} parent=5 // pred_region
        // Predicated region
        $region41: #{tpu_custom_call.1} parent=39 // pred_check
          %p233 = pneg %p38
        $region42: #{tpu_custom_call.1} parent=39 // pred_check_branch
          %235 = sbr.rel (%p233) target = $region44
        $region43: #{tpu_custom_call.1} parent=39 // pred_region
          %s236 = smul.u32 128, %s18
          %p237 = scmp.lt.s32.totalorder %s236, 255
          %s238 = scalar_select %p237, %s236, 255
          %s239 = smul.addr %s238, 8
          %s240 = scalar_lea.vmem %s0, %s239
          %s241 = smul.u32 128, %s18
        $region44: #{tpu_custom_call.1} parent=39 // pred_fallthru
          _
      $region40: #{tpu_custom_call.1} parent=5 // pred_fallthru
        _
      %p242 = scmp.le.s32.totalorder 1, %s18
      %p243 = scmp.lt.s32.totalorder %s18, 3
      %p244 = pnand %p242, %p243
      %p245 = pneg %p244
      // Predicated region
      $region45: #{tpu_custom_call.1} parent=5 // pred_check
        _
      $region46: #{tpu_custom_call.1} parent=5 // pred_check_branch
        %247 = sbr.rel (%p244) target = $region48
      $region47: #{tpu_custom_call.1} parent=5 // pred_region
        %s248 = ssub.s32 %s18, 1
        %s249 = smul.u32 128, %s23
        %p250 = scmp.lt.s32.totalorder %s249, 255
        %s251 = scalar_select %p250, %s249, 255
        %s252 = smul.addr %s251, 8
        %s253 = scalar_lea.vmem %s0, %s252
        %p254 = pneg %p44
        %p255 = pneg %p41
        %p256 = pneg %p65
        %p257 = pneg %p62
        %p258 = pneg %p86
        %p259 = pneg %p83
        %p260 = pneg %p107
        %p261 = pneg %p104
        %p262 = pneg %p128
        %p263 = pneg %p125
        %p264 = pneg %p149
        %p265 = pneg %p146
        %p266 = pneg %p170
        %p267 = pneg %p167
        %p268 = pneg %p196
        %p269 = pneg %p193
        %s270 = sand.u32 %s183, 1
        %s271 = scalar_lea.sflag [#allocation4], %s270
        %s272 = sand.u32 %s183, 1
        %s273 = smul.addr %s272, 8
        %s274 = scalar_lea.vmem [#allocation3], %s273
        %s275 = smul.u32 128, %s23
        %p276 = scmp.lt.s32.totalorder %s275, 255
        %s277 = scalar_select %p276, %s275, 255
        %s278 = smul.addr %s277, 8
        %s279 = scalar_lea.vmem %s0, %s278
        %s280 = smul.u32 128, %s23
        %s281 = smul.u32 8, %s23
        %v283 = vld [vmem:[%s279] sm:$0xff]
        %v284 = vld [vmem:[%s279 + $0x8] sm:$0xff]
        %v285 = vld [vmem:[%s279 + $0x10] sm:$0xff]
        %v286 = vld [vmem:[%s279 + $0x18] sm:$0xff]
        %v287 = vld [vmem:[%s279 + $0x20] sm:$0xff]
        %v288 = vld [vmem:[%s279 + $0x28] sm:$0xff]
        %v289 = vld [vmem:[%s279 + $0x30] sm:$0xff]
        %v290 = vld [vmem:[%s279 + $0x38] sm:$0xff]
        %v291 = vld [vmem:[%s279 + $0x40] sm:$0xff]
        %v292 = vld [vmem:[%s279 + $0x48] sm:$0xff]
        %v293 = vld [vmem:[%s279 + $0x50] sm:$0xff]
        %v294 = vld [vmem:[%s279 + $0x58] sm:$0xff]
        %v295 = vld [vmem:[%s279 + $0x60] sm:$0xff]
        %v296 = vld [vmem:[%s279 + $0x68] sm:$0xff]
        %v297 = vld [vmem:[%s279 + $0x70] sm:$0xff]
        %v298 = vld [vmem:[%s279 + $0x78] sm:$0xff]
        %v299 = vld [vmem:[%s279 + $0x80] sm:$0xff]
        %v300 = vld [vmem:[%s279 + $0x88] sm:$0xff]
        %v301 = vld [vmem:[%s279 + $0x90] sm:$0xff]
        %v302 = vld [vmem:[%s279 + $0x98] sm:$0xff]
        %v303 = vld [vmem:[%s279 + $0xa0] sm:$0xff]
        %v304 = vld [vmem:[%s279 + $0xa8] sm:$0xff]
        %v305 = vld [vmem:[%s279 + $0xb0] sm:$0xff]
        %v306 = vld [vmem:[%s279 + $0xb8] sm:$0xff]
        %v307 = vld [vmem:[%s279 + $0xc0] sm:$0xff]
        %v308 = vld [vmem:[%s279 + $0xc8] sm:$0xff]
        %v309 = vld [vmem:[%s279 + $0xd0] sm:$0xff]
        %v310 = vld [vmem:[%s279 + $0xd8] sm:$0xff]
        %v311 = vld [vmem:[%s279 + $0xe0] sm:$0xff]
        %v312 = vld [vmem:[%s279 + $0xe8] sm:$0xff]
        %v313 = vld [vmem:[%s279 + $0xf0] sm:$0xff]
        %v314 = vld [vmem:[%s279 + $0xf8] sm:$0xff]
        %v315 = vld [vmem:[%s279 + $0x100] sm:$0xff]
        %v316 = vld [vmem:[%s279 + $0x108] sm:$0xff]
        %v317 = vld [vmem:[%s279 + $0x110] sm:$0xff]
        %v318 = vld [vmem:[%s279 + $0x118] sm:$0xff]
        %v319 = vld [vmem:[%s279 + $0x120] sm:$0xff]
        %v320 = vld [vmem:[%s279 + $0x128] sm:$0xff]
        %v321 = vld [vmem:[%s279 + $0x130] sm:$0xff]
        %v322 = vld [vmem:[%s279 + $0x138] sm:$0xff]
        %v323 = vld [vmem:[%s279 + $0x140] sm:$0xff]
        %v324 = vld [vmem:[%s279 + $0x148] sm:$0xff]
        %v325 = vld [vmem:[%s279 + $0x150] sm:$0xff]
        %v326 = vld [vmem:[%s279 + $0x158] sm:$0xff]
        %v327 = vld [vmem:[%s279 + $0x160] sm:$0xff]
        %v328 = vld [vmem:[%s279 + $0x168] sm:$0xff]
        %v329 = vld [vmem:[%s279 + $0x170] sm:$0xff]
        %v330 = vld [vmem:[%s279 + $0x178] sm:$0xff]
        %v331 = vld [vmem:[%s279 + $0x180] sm:$0xff]
        %v332 = vld [vmem:[%s279 + $0x188] sm:$0xff]
        %v333 = vld [vmem:[%s279 + $0x190] sm:$0xff]
        %v334 = vld [vmem:[%s279 + $0x198] sm:$0xff]
        %v335 = vld [vmem:[%s279 + $0x1a0] sm:$0xff]
        %v336 = vld [vmem:[%s279 + $0x1a8] sm:$0xff]
        %v337 = vld [vmem:[%s279 + $0x1b0] sm:$0xff]
        %v338 = vld [vmem:[%s279 + $0x1b8] sm:$0xff]
        %v339 = vld [vmem:[%s279 + $0x1c0] sm:$0xff]
        %v340 = vld [vmem:[%s279 + $0x1c8] sm:$0xff]
        %v341 = vld [vmem:[%s279 + $0x1d0] sm:$0xff]
        %v342 = vld [vmem:[%s279 + $0x1d8] sm:$0xff]
        %v343 = vld [vmem:[%s279 + $0x1e0] sm:$0xff]
        %v344 = vld [vmem:[%s279 + $0x1e8] sm:$0xff]
        %v345 = vld [vmem:[%s279 + $0x1f0] sm:$0xff]
        %v346 = vld [vmem:[%s279 + $0x1f8] sm:$0xff]
        %v347 = vld [vmem:[%s279 + $0x200] sm:$0xff]
        %v348 = vld [vmem:[%s279 + $0x208] sm:$0xff]
        %v349 = vld [vmem:[%s279 + $0x210] sm:$0xff]
        %v350 = vld [vmem:[%s279 + $0x218] sm:$0xff]
        %v351 = vld [vmem:[%s279 + $0x220] sm:$0xff]
        %v352 = vld [vmem:[%s279 + $0x228] sm:$0xff]
        %v353 = vld [vmem:[%s279 + $0x230] sm:$0xff]
        %v354 = vld [vmem:[%s279 + $0x238] sm:$0xff]
        %v355 = vld [vmem:[%s279 + $0x240] sm:$0xff]
        %v356 = vld [vmem:[%s279 + $0x248] sm:$0xff]
        %v357 = vld [vmem:[%s279 + $0x250] sm:$0xff]
        %v358 = vld [vmem:[%s279 + $0x258] sm:$0xff]
        %v359 = vld [vmem:[%s279 + $0x260] sm:$0xff]
        %v360 = vld [vmem:[%s279 + $0x268] sm:$0xff]
        %v361 = vld [vmem:[%s279 + $0x270] sm:$0xff]
        %v362 = vld [vmem:[%s279 + $0x278] sm:$0xff]
        %v363 = vld [vmem:[%s279 + $0x280] sm:$0xff]
        %v364 = vld [vmem:[%s279 + $0x288] sm:$0xff]
        %v365 = vld [vmem:[%s279 + $0x290] sm:$0xff]
        %v366 = vld [vmem:[%s279 + $0x298] sm:$0xff]
        %v367 = vld [vmem:[%s279 + $0x2a0] sm:$0xff]
        %v368 = vld [vmem:[%s279 + $0x2a8] sm:$0xff]
        %v369 = vld [vmem:[%s279 + $0x2b0] sm:$0xff]
        %v370 = vld [vmem:[%s279 + $0x2b8] sm:$0xff]
        %v371 = vld [vmem:[%s279 + $0x2c0] sm:$0xff]
        %v372 = vld [vmem:[%s279 + $0x2c8] sm:$0xff]
        %v373 = vld [vmem:[%s279 + $0x2d0] sm:$0xff]
        %v374 = vld [vmem:[%s279 + $0x2d8] sm:$0xff]
        %v375 = vld [vmem:[%s279 + $0x2e0] sm:$0xff]
        %v376 = vld [vmem:[%s279 + $0x2e8] sm:$0xff]
        %v377 = vld [vmem:[%s279 + $0x2f0] sm:$0xff]
        %v378 = vld [vmem:[%s279 + $0x2f8] sm:$0xff]
        %v379 = vld [vmem:[%s279 + $0x300] sm:$0xff]
        %v380 = vld [vmem:[%s279 + $0x308] sm:$0xff]
        %v381 = vld [vmem:[%s279 + $0x310] sm:$0xff]
        %v382 = vld [vmem:[%s279 + $0x318] sm:$0xff]
        %v383 = vld [vmem:[%s279 + $0x320] sm:$0xff]
        %v384 = vld [vmem:[%s279 + $0x328] sm:$0xff]
        %v385 = vld [vmem:[%s279 + $0x330] sm:$0xff]
        %v386 = vld [vmem:[%s279 + $0x338] sm:$0xff]
        %v387 = vld [vmem:[%s279 + $0x340] sm:$0xff]
        %v388 = vld [vmem:[%s279 + $0x348] sm:$0xff]
        %v389 = vld [vmem:[%s279 + $0x350] sm:$0xff]
        %v390 = vld [vmem:[%s279 + $0x358] sm:$0xff]
        %v391 = vld [vmem:[%s279 + $0x360] sm:$0xff]
        %v392 = vld [vmem:[%s279 + $0x368] sm:$0xff]
        %v393 = vld [vmem:[%s279 + $0x370] sm:$0xff]
        %v394 = vld [vmem:[%s279 + $0x378] sm:$0xff]
        %v395 = vld [vmem:[%s279 + $0x380] sm:$0xff]
        %v396 = vld [vmem:[%s279 + $0x388] sm:$0xff]
        %v397 = vld [vmem:[%s279 + $0x390] sm:$0xff]
        %v398 = vld [vmem:[%s279 + $0x398] sm:$0xff]
        %v399 = vld [vmem:[%s279 + $0x3a0] sm:$0xff]
        %v400 = vld [vmem:[%s279 + $0x3a8] sm:$0xff]
        %v401 = vld [vmem:[%s279 + $0x3b0] sm:$0xff]
        %v402 = vld [vmem:[%s279 + $0x3b8] sm:$0xff]
        %v403 = vld [vmem:[%s279 + $0x3c0] sm:$0xff]
        %v404 = vld [vmem:[%s279 + $0x3c8] sm:$0xff]
        %v405 = vld [vmem:[%s279 + $0x3d0] sm:$0xff]
        %v406 = vld [vmem:[%s279 + $0x3d8] sm:$0xff]
        %v407 = vld [vmem:[%s279 + $0x3e0] sm:$0xff]
        %v408 = vld [vmem:[%s279 + $0x3e8] sm:$0xff]
        %v409 = vld [vmem:[%s279 + $0x3f0] sm:$0xff]
        %v410 = vld [vmem:[%s279 + $0x3f8] sm:$0xff]
        %411 = vxpose.xlu0.b32.start [1/16] %v283, 128
        %412 = vxpose.xlu0.b32.cont [2/16] %v284, 128
        %413 = vxpose.xlu0.b32.cont [3/16] %v285, 128
        %414 = vxpose.xlu0.b32.cont [4/16] %v286, 128
        %415 = vxpose.xlu0.b32.cont [5/16] %v287, 128
        %416 = vxpose.xlu0.b32.cont [6/16] %v288, 128
        %417 = vxpose.xlu0.b32.cont [7/16] %v289, 128
        %418 = vxpose.xlu0.b32.cont [8/16] %v290, 128
        %419 = vxpose.xlu0.b32.cont [9/16] %v291, 128
        %420 = vxpose.xlu0.b32.cont [10/16] %v292, 128
        %421 = vxpose.xlu0.b32.cont [11/16] %v293, 128
        %422 = vxpose.xlu0.b32.cont [12/16] %v294, 128
        %423 = vxpose.xlu0.b32.cont [13/16] %v295, 128
        %424 = vxpose.xlu0.b32.cont [14/16] %v296, 128
        %425 = vxpose.xlu0.b32.cont [15/16] %v297, 128
        %426 = vxpose.xlu0.b32.end [16/16] %v298, 128
        %v427 = vpop.trf.xlu0
        %v428 = vpop.trf.xlu0
        %v429 = vpop.trf.xlu0
        %v430 = vpop.trf.xlu0
        %v431 = vpop.trf.xlu0
        %v432 = vpop.trf.xlu0
        %v433 = vpop.trf.xlu0
        %v434 = vpop.trf.xlu0
        %v435 = vpop.trf.xlu0
        %v436 = vpop.trf.xlu0
        %v437 = vpop.trf.xlu0
        %v438 = vpop.trf.xlu0
        %v439 = vpop.trf.xlu0
        %v440 = vpop.trf.xlu0
        %v441 = vpop.trf.xlu0
        %v442 = vpop.trf.xlu0
        %443 = vxpose.xlu0.b32.start [1/16] %v299, 128
        %444 = vxpose.xlu0.b32.cont [2/16] %v300, 128
        %445 = vxpose.xlu0.b32.cont [3/16] %v301, 128
        %446 = vxpose.xlu0.b32.cont [4/16] %v302, 128
        %447 = vxpose.xlu0.b32.cont [5/16] %v303, 128
        %448 = vxpose.xlu0.b32.cont [6/16] %v304, 128
        %449 = vxpose.xlu0.b32.cont [7/16] %v305, 128
        %450 = vxpose.xlu0.b32.cont [8/16] %v306, 128
        %451 = vxpose.xlu0.b32.cont [9/16] %v307, 128
        %452 = vxpose.xlu0.b32.cont [10/16] %v308, 128
        %453 = vxpose.xlu0.b32.cont [11/16] %v309, 128
        %454 = vxpose.xlu0.b32.cont [12/16] %v310, 128
        %455 = vxpose.xlu0.b32.cont [13/16] %v311, 128
        %456 = vxpose.xlu0.b32.cont [14/16] %v312, 128
        %457 = vxpose.xlu0.b32.cont [15/16] %v313, 128
        %458 = vxpose.xlu0.b32.end [16/16] %v314, 128
        %v459 = vpop.trf.xlu0
        %v460 = vpop.trf.xlu0
        %v461 = vpop.trf.xlu0
        %v462 = vpop.trf.xlu0
        %v463 = vpop.trf.xlu0
        %v464 = vpop.trf.xlu0
        %v465 = vpop.trf.xlu0
        %v466 = vpop.trf.xlu0
        %v467 = vpop.trf.xlu0
        %v468 = vpop.trf.xlu0
        %v469 = vpop.trf.xlu0
        %v470 = vpop.trf.xlu0
        %v471 = vpop.trf.xlu0
        %v472 = vpop.trf.xlu0
        %v473 = vpop.trf.xlu0
        %v474 = vpop.trf.xlu0
        %475 = vxpose.xlu0.b32.start [1/16] %v315, 128
        %476 = vxpose.xlu0.b32.cont [2/16] %v316, 128
        %477 = vxpose.xlu0.b32.cont [3/16] %v317, 128
        %478 = vxpose.xlu0.b32.cont [4/16] %v318, 128
        %479 = vxpose.xlu0.b32.cont [5/16] %v319, 128
        %480 = vxpose.xlu0.b32.cont [6/16] %v320, 128
        %481 = vxpose.xlu0.b32.cont [7/16] %v321, 128
        %482 = vxpose.xlu0.b32.cont [8/16] %v322, 128
        %483 = vxpose.xlu0.b32.cont [9/16] %v323, 128
        %484 = vxpose.xlu0.b32.cont [10/16] %v324, 128
        %485 = vxpose.xlu0.b32.cont [11/16] %v325, 128
        %486 = vxpose.xlu0.b32.cont [12/16] %v326, 128
        %487 = vxpose.xlu0.b32.cont [13/16] %v327, 128
        %488 = vxpose.xlu0.b32.cont [14/16] %v328, 128
        %489 = vxpose.xlu0.b32.cont [15/16] %v329, 128
        %490 = vxpose.xlu0.b32.end [16/16] %v330, 128
        %v491 = vpop.trf.xlu0
        %v492 = vpop.trf.xlu0
        %v493 = vpop.trf.xlu0
        %v494 = vpop.trf.xlu0
        %v495 = vpop.trf.xlu0
        %v496 = vpop.trf.xlu0
        %v497 = vpop.trf.xlu0
        %v498 = vpop.trf.xlu0
        %v499 = vpop.trf.xlu0
        %v500 = vpop.trf.xlu0
        %v501 = vpop.trf.xlu0
        %v502 = vpop.trf.xlu0
        %v503 = vpop.trf.xlu0
        %v504 = vpop.trf.xlu0
        %v505 = vpop.trf.xlu0
        %v506 = vpop.trf.xlu0
        %507 = vxpose.xlu0.b32.start [1/16] %v331, 128
        %508 = vxpose.xlu0.b32.cont [2/16] %v332, 128
        %509 = vxpose.xlu0.b32.cont [3/16] %v333, 128
        %510 = vxpose.xlu0.b32.cont [4/16] %v334, 128
        %511 = vxpose.xlu0.b32.cont [5/16] %v335, 128
        %512 = vxpose.xlu0.b32.cont [6/16] %v336, 128
        %513 = vxpose.xlu0.b32.cont [7/16] %v337, 128
        %514 = vxpose.xlu0.b32.cont [8/16] %v338, 128
        %515 = vxpose.xlu0.b32.cont [9/16] %v339, 128
        %516 = vxpose.xlu0.b32.cont [10/16] %v340, 128
        %517 = vxpose.xlu0.b32.cont [11/16] %v341, 128
        %518 = vxpose.xlu0.b32.cont [12/16] %v342, 128
        %519 = vxpose.xlu0.b32.cont [13/16] %v343, 128
        %520 = vxpose.xlu0.b32.cont [14/16] %v344, 128
        %521 = vxpose.xlu0.b32.cont [15/16] %v345, 128
        %522 = vxpose.xlu0.b32.end [16/16] %v346, 128
        %v523 = vpop.trf.xlu0
        %v524 = vpop.trf.xlu0
        %v525 = vpop.trf.xlu0
        %v526 = vpop.trf.xlu0
        %v527 = vpop.trf.xlu0
        %v528 = vpop.trf.xlu0
        %v529 = vpop.trf.xlu0
        %v530 = vpop.trf.xlu0
        %v531 = vpop.trf.xlu0
        %v532 = vpop.trf.xlu0
        %v533 = vpop.trf.xlu0
        %v534 = vpop.trf.xlu0
        %v535 = vpop.trf.xlu0
        %v536 = vpop.trf.xlu0
        %v537 = vpop.trf.xlu0
        %v538 = vpop.trf.xlu0
        %539 = vxpose.xlu0.b32.start [1/16] %v347, 128
        %540 = vxpose.xlu0.b32.cont [2/16] %v348, 128
        %541 = vxpose.xlu0.b32.cont [3/16] %v349, 128
        %542 = vxpose.xlu0.b32.cont [4/16] %v350, 128
        %543 = vxpose.xlu0.b32.cont [5/16] %v351, 128
        %544 = vxpose.xlu0.b32.cont [6/16] %v352, 128
        %545 = vxpose.xlu0.b32.cont [7/16] %v353, 128
        %546 = vxpose.xlu0.b32.cont [8/16] %v354, 128
        %547 = vxpose.xlu0.b32.cont [9/16] %v355, 128
        %548 = vxpose.xlu0.b32.cont [10/16] %v356, 128
        %549 = vxpose.xlu0.b32.cont [11/16] %v357, 128
        %550 = vxpose.xlu0.b32.cont [12/16] %v358, 128
        %551 = vxpose.xlu0.b32.cont [13/16] %v359, 128
        %552 = vxpose.xlu0.b32.cont [14/16] %v360, 128
        %553 = vxpose.xlu0.b32.cont [15/16] %v361, 128
        %554 = vxpose.xlu0.b32.end [16/16] %v362, 128
        %v555 = vpop.trf.xlu0
        %v556 = vpop.trf.xlu0
        %v557 = vpop.trf.xlu0
        %v558 = vpop.trf.xlu0
        %v559 = vpop.trf.xlu0
        %v560 = vpop.trf.xlu0
        %v561 = vpop.trf.xlu0
        %v562 = vpop.trf.xlu0
        %v563 = vpop.trf.xlu0
        %v564 = vpop.trf.xlu0
        %v565 = vpop.trf.xlu0
        %v566 = vpop.trf.xlu0
        %v567 = vpop.trf.xlu0
        %v568 = vpop.trf.xlu0
        %v569 = vpop.trf.xlu0
        %v570 = vpop.trf.xlu0
        %571 = vxpose.xlu0.b32.start [1/16] %v363, 128
        %572 = vxpose.xlu0.b32.cont [2/16] %v364, 128
        %573 = vxpose.xlu0.b32.cont [3/16] %v365, 128
        %574 = vxpose.xlu0.b32.cont [4/16] %v366, 128
        %575 = vxpose.xlu0.b32.cont [5/16] %v367, 128
        %576 = vxpose.xlu0.b32.cont [6/16] %v368, 128
        %577 = vxpose.xlu0.b32.cont [7/16] %v369, 128
        %578 = vxpose.xlu0.b32.cont [8/16] %v370, 128
        %579 = vxpose.xlu0.b32.cont [9/16] %v371, 128
        %580 = vxpose.xlu0.b32.cont [10/16] %v372, 128
        %581 = vxpose.xlu0.b32.cont [11/16] %v373, 128
        %582 = vxpose.xlu0.b32.cont [12/16] %v374, 128
        %583 = vxpose.xlu0.b32.cont [13/16] %v375, 128
        %584 = vxpose.xlu0.b32.cont [14/16] %v376, 128
        %585 = vxpose.xlu0.b32.cont [15/16] %v377, 128
        %586 = vxpose.xlu0.b32.end [16/16] %v378, 128
        %v587 = vpop.trf.xlu0
        %v588 = vpop.trf.xlu0
        %v589 = vpop.trf.xlu0
        %v590 = vpop.trf.xlu0
        %v591 = vpop.trf.xlu0
        %v592 = vpop.trf.xlu0
        %v593 = vpop.trf.xlu0
        %v594 = vpop.trf.xlu0
        %v595 = vpop.trf.xlu0
        %v596 = vpop.trf.xlu0
        %v597 = vpop.trf.xlu0
        %v598 = vpop.trf.xlu0
        %v599 = vpop.trf.xlu0
        %v600 = vpop.trf.xlu0
        %v601 = vpop.trf.xlu0
        %v602 = vpop.trf.xlu0
        %603 = vxpose.xlu0.b32.start [1/16] %v379, 128
        %604 = vxpose.xlu0.b32.cont [2/16] %v380, 128
        %605 = vxpose.xlu0.b32.cont [3/16] %v381, 128
        %606 = vxpose.xlu0.b32.cont [4/16] %v382, 128
        %607 = vxpose.xlu0.b32.cont [5/16] %v383, 128
        %608 = vxpose.xlu0.b32.cont [6/16] %v384, 128
        %609 = vxpose.xlu0.b32.cont [7/16] %v385, 128
        %610 = vxpose.xlu0.b32.cont [8/16] %v386, 128
        %611 = vxpose.xlu0.b32.cont [9/16] %v387, 128
        %612 = vxpose.xlu0.b32.cont [10/16] %v388, 128
        %613 = vxpose.xlu0.b32.cont [11/16] %v389, 128
        %614 = vxpose.xlu0.b32.cont [12/16] %v390, 128
        %615 = vxpose.xlu0.b32.cont [13/16] %v391, 128
        %616 = vxpose.xlu0.b32.cont [14/16] %v392, 128
        %617 = vxpose.xlu0.b32.cont [15/16] %v393, 128
        %618 = vxpose.xlu0.b32.end [16/16] %v394, 128
        %v619 = vpop.trf.xlu0
        %v620 = vpop.trf.xlu0
        %v621 = vpop.trf.xlu0
        %v622 = vpop.trf.xlu0
        %v623 = vpop.trf.xlu0
        %v624 = vpop.trf.xlu0
        %v625 = vpop.trf.xlu0
        %v626 = vpop.trf.xlu0
        %v627 = vpop.trf.xlu0
        %v628 = vpop.trf.xlu0
        %v629 = vpop.trf.xlu0
        %v630 = vpop.trf.xlu0
        %v631 = vpop.trf.xlu0
        %v632 = vpop.trf.xlu0
        %v633 = vpop.trf.xlu0
        %v634 = vpop.trf.xlu0
        %635 = vxpose.xlu0.b32.start [1/16] %v395, 128
        %636 = vxpose.xlu0.b32.cont [2/16] %v396, 128
        %637 = vxpose.xlu0.b32.cont [3/16] %v397, 128
        %638 = vxpose.xlu0.b32.cont [4/16] %v398, 128
        %639 = vxpose.xlu0.b32.cont [5/16] %v399, 128
        %640 = vxpose.xlu0.b32.cont [6/16] %v400, 128
        %641 = vxpose.xlu0.b32.cont [7/16] %v401, 128
        %642 = vxpose.xlu0.b32.cont [8/16] %v402, 128
        %643 = vxpose.xlu0.b32.cont [9/16] %v403, 128
        %644 = vxpose.xlu0.b32.cont [10/16] %v404, 128
        %645 = vxpose.xlu0.b32.cont [11/16] %v405, 128
        %646 = vxpose.xlu0.b32.cont [12/16] %v406, 128
        %647 = vxpose.xlu0.b32.cont [13/16] %v407, 128
        %648 = vxpose.xlu0.b32.cont [14/16] %v408, 128
        %649 = vxpose.xlu0.b32.cont [15/16] %v409, 128
        %650 = vxpose.xlu0.b32.end [16/16] %v410, 128
        %v651 = vpop.trf.xlu0
        %v652 = vpop.trf.xlu0
        %v653 = vpop.trf.xlu0
        %v654 = vpop.trf.xlu0
        %v655 = vpop.trf.xlu0
        %v656 = vpop.trf.xlu0
        %v657 = vpop.trf.xlu0
        %v658 = vpop.trf.xlu0
        %v659 = vpop.trf.xlu0
        %v660 = vpop.trf.xlu0
        %v661 = vpop.trf.xlu0
        %v662 = vpop.trf.xlu0
        %v663 = vpop.trf.xlu0
        %v664 = vpop.trf.xlu0
        %v665 = vpop.trf.xlu0
        %v666 = vpop.trf.xlu0
        %v667 = vpack.c.bf16 %v428, %v427
        %v668 = vpack.c.bf16 %v460, %v459
        %v669 = vpack.c.bf16 %v492, %v491
        %v670 = vpack.c.bf16 %v524, %v523
        %v671 = vpack.c.bf16 %v556, %v555
        %v672 = vpack.c.bf16 %v588, %v587
        %v673 = vpack.c.bf16 %v620, %v619
        %v674 = vpack.c.bf16 %v652, %v651
        %v675 = vpack.c.bf16 %v430, %v429
        %v676 = vpack.c.bf16 %v462, %v461
        %v677 = vpack.c.bf16 %v494, %v493
        %v678 = vpack.c.bf16 %v526, %v525
        %v679 = vpack.c.bf16 %v558, %v557
        %v680 = vpack.c.bf16 %v590, %v589
        %v681 = vpack.c.bf16 %v622, %v621
        %v682 = vpack.c.bf16 %v654, %v653
        %v683 = vld [vmem:[%s1] sm:$0xf]
        %v684 = vld [vmem:[%s1 + $0x4] sm:$0xf]
        %v685 = vld [vmem:[%s1 + $0x8] sm:$0xf]
        %v686 = vld [vmem:[%s1 + $0xc] sm:$0xf]
        %v687 = vld [vmem:[%s1 + $0x10] sm:$0xf]
        %v688 = vld [vmem:[%s1 + $0x14] sm:$0xf]
        %v689 = vld [vmem:[%s1 + $0x18] sm:$0xf]
        %v690 = vld [vmem:[%s1 + $0x1c] sm:$0xf]
        %v691 = vld [vmem:[%s2] sm:$0xff]
        %v692 = vld [vmem:[%s2 + $0x8] sm:$0xff]
        %v693 = vld [vmem:[%s2 + $0x10] sm:$0xff]
        %v694 = vld [vmem:[%s2 + $0x18] sm:$0xff]
        %v695 = vld [vmem:[%s2 + $0x20] sm:$0xff]
        %v696 = vld [vmem:[%s2 + $0x28] sm:$0xff]
        %v697 = vld [vmem:[%s2 + $0x30] sm:$0xff]
        %v698 = vld [vmem:[%s2 + $0x38] sm:$0xff]
        %700 = vset.pattern.permute.xlu0 0
        %701 = vperm.xlu0 %700, %v691
        %v702 = vpop.permute.xlu0 %701
        %705 = vset.pattern.permute.xlu0 0
        %706 = vperm.xlu0 %705, %v692
        %v707 = vpop.permute.xlu0 %706
        %710 = vset.pattern.permute.xlu0 0
        %711 = vperm.xlu0 %710, %v693
        %v712 = vpop.permute.xlu0 %711
        %715 = vset.pattern.permute.xlu0 0
        %716 = vperm.xlu0 %715, %v694
        %v717 = vpop.permute.xlu0 %716
        %720 = vset.pattern.permute.xlu0 0
        %721 = vperm.xlu0 %720, %v695
        %v722 = vpop.permute.xlu0 %721
        %725 = vset.pattern.permute.xlu0 0
        %726 = vperm.xlu0 %725, %v696
        %v727 = vpop.permute.xlu0 %726
        %730 = vset.pattern.permute.xlu0 0
        %731 = vperm.xlu0 %730, %v697
        %v732 = vpop.permute.xlu0 %731
        %735 = vset.pattern.permute.xlu0 0
        %736 = vperm.xlu0 %735, %v698
        %v737 = vpop.permute.xlu0 %736
        %v747 = vunpack.c.l.b16 %v683
        %v748 = vunpack.c.l.b16 %v684
        %v749 = vunpack.c.l.b16 %v685
        %v750 = vunpack.c.l.b16 %v686
        %v751 = vunpack.c.l.b16 %v687
        %v752 = vunpack.c.l.b16 %v688
        %v753 = vunpack.c.l.b16 %v689
        %v754 = vunpack.c.l.b16 %v690
        %v755 = vpack.c.b16 %v748, %v747
        %v756 = vpack.c.b16 %v750, %v749
        %v757 = vpack.c.b16 %v752, %v751
        %v758 = vpack.c.b16 %v754, %v753
        %vm759 = vcmask 261120
        %v761 = vsel %vm759, %v755, 0
        %v764 = vsel %vm759, %v756, 0
        %v767 = vsel %vm759, %v757, 0
        %v770 = vsel %vm759, %v758, 0
        %772 = vmatpush.bf16.msra.mxu0 0
        %773 = vmatpush.bf16.msra.mxu0 0
        %774 = vmatpush.bf16.msra.mxu0 0
        %775 = vmatpush.bf16.msra.mxu0 0
        %776 = vmatpush.bf16.msra.mxu0 0
        %777 = vmatpush.bf16.msra.mxu0 0
        %778 = vmatpush.bf16.msra.mxu0 %v675
        %779 = vmatpush.bf16.msra.mxu0 %v667
        %780 = vmatmul.bf16.gmra.mxu0 %v761
        %v781 = vpop.f32.mrf.mxu0
        %v782 = vadd.f32 %v702, %v781
        %v783 = vpop.f32.mrf.mxu0
        %v784 = vadd.f32 %v707, %v783
        %785 = vmatmul.bf16.gmra.mxu0 %v764
        %v786 = vpop.f32.mrf.mxu0
        %v787 = vadd.f32 %v712, %v786
        %v788 = vpop.f32.mrf.mxu0
        %v789 = vadd.f32 %v717, %v788
        %790 = vmatmul.bf16.gmra.mxu0 %v767
        %v791 = vpop.f32.mrf.mxu0
        %v792 = vadd.f32 %v722, %v791
        %v793 = vpop.f32.mrf.mxu0
        %v794 = vadd.f32 %v727, %v793
        %795 = vmatmul.bf16.gmra.mxu0 %v770
        %v796 = vpop.f32.mrf.mxu0
        %v797 = vadd.f32 %v732, %v796
        %v798 = vpop.f32.mrf.mxu0
        %v799 = vadd.f32 %v737, %v798
        %800 = vdwg.mxu0
        %801 = vmatpush.bf16.msra.mxu0 0
        %802 = vmatpush.bf16.msra.mxu0 0
        %803 = vmatpush.bf16.msra.mxu0 0
        %804 = vmatpush.bf16.msra.mxu0 0
        %805 = vmatpush.bf16.msra.mxu0 0
        %806 = vmatpush.bf16.msra.mxu0 0
        %807 = vmatpush.bf16.msra.mxu0 %v676
        %808 = vmatpush.bf16.msra.mxu0 %v668
        %809 = vmatmul.bf16.gmra.mxu0 %v761
        %v810 = vpop.f32.mrf.mxu0
        %v811 = vadd.f32 %v702, %v810
        %v812 = vpop.f32.mrf.mxu0
        %v813 = vadd.f32 %v707, %v812
        %814 = vmatmul.bf16.gmra.mxu0 %v764
        %v815 = vpop.f32.mrf.mxu0
        %v816 = vadd.f32 %v712, %v815
        %v817 = vpop.f32.mrf.mxu0
        %v818 = vadd.f32 %v717, %v817
        %819 = vmatmul.bf16.gmra.mxu0 %v767
        %v820 = vpop.f32.mrf.mxu0
        %v821 = vadd.f32 %v722, %v820
        %v822 = vpop.f32.mrf.mxu0
        %v823 = vadd.f32 %v727, %v822
        %824 = vmatmul.bf16.gmra.mxu0 %v770
        %v825 = vpop.f32.mrf.mxu0
        %v826 = vadd.f32 %v732, %v825
        %v827 = vpop.f32.mrf.mxu0
        %v828 = vadd.f32 %v737, %v827
        %829 = vdwg.mxu0
        %830 = vmatpush.bf16.msra.mxu0 0
        %831 = vmatpush.bf16.msra.mxu0 0
        %832 = vmatpush.bf16.msra.mxu0 0
        %833 = vmatpush.bf16.msra.mxu0 0
        %834 = vmatpush.bf16.msra.mxu0 0
        %835 = vmatpush.bf16.msra.mxu0 0
        %836 = vmatpush.bf16.msra.mxu0 %v677
        %837 = vmatpush.bf16.msra.mxu0 %v669
        %838 = vmatmul.bf16.gmra.mxu0 %v761
        %v839 = vpop.f32.mrf.mxu0
        %v840 = vadd.f32 %v702, %v839
        %v841 = vpop.f32.mrf.mxu0
        %v842 = vadd.f32 %v707, %v841
        %843 = vmatmul.bf16.gmra.mxu0 %v764
        %v844 = vpop.f32.mrf.mxu0
        %v845 = vadd.f32 %v712, %v844
        %v846 = vpop.f32.mrf.mxu0
        %v847 = vadd.f32 %v717, %v846
        %848 = vmatmul.bf16.gmra.mxu0 %v767
        %v849 = vpop.f32.mrf.mxu0
        %v850 = vadd.f32 %v722, %v849
        %v851 = vpop.f32.mrf.mxu0
        %v852 = vadd.f32 %v727, %v851
        %853 = vmatmul.bf16.gmra.mxu0 %v770
        %v854 = vpop.f32.mrf.mxu0
        %v855 = vadd.f32 %v732, %v854
        %v856 = vpop.f32.mrf.mxu0
        %v857 = vadd.f32 %v737, %v856
        %858 = vdwg.mxu0
        %859 = vmatpush.bf16.msra.mxu0 0
        %860 = vmatpush.bf16.msra.mxu0 0
        %861 = vmatpush.bf16.msra.mxu0 0
        %862 = vmatpush.bf16.msra.mxu0 0
        %863 = vmatpush.bf16.msra.mxu0 0
        %864 = vmatpush.bf16.msra.mxu0 0
        %865 = vmatpush.bf16.msra.mxu0 %v678
        %866 = vmatpush.bf16.msra.mxu0 %v670
        %867 = vmatmul.bf16.gmra.mxu0 %v761
        %v868 = vpop.f32.mrf.mxu0
        %v869 = vadd.f32 %v702, %v868
        %v870 = vpop.f32.mrf.mxu0
        %v871 = vadd.f32 %v707, %v870
        %872 = vmatmul.bf16.gmra.mxu0 %v764
        %v873 = vpop.f32.mrf.mxu0
        %v874 = vadd.f32 %v712, %v873
        %v875 = vpop.f32.mrf.mxu0
        %v876 = vadd.f32 %v717, %v875
        %877 = vmatmul.bf16.gmra.mxu0 %v767
        %v878 = vpop.f32.mrf.mxu0
        %v879 = vadd.f32 %v722, %v878
        %v880 = vpop.f32.mrf.mxu0
        %v881 = vadd.f32 %v727, %v880
        %882 = vmatmul.bf16.gmra.mxu0 %v770
        %v883 = vpop.f32.mrf.mxu0
        %v884 = vadd.f32 %v732, %v883
        %v885 = vpop.f32.mrf.mxu0
        %v886 = vadd.f32 %v737, %v885
        %887 = vdwg.mxu0
        %888 = vmatpush.bf16.msra.mxu0 0
        %889 = vmatpush.bf16.msra.mxu0 0
        %890 = vmatpush.bf16.msra.mxu0 0
        %891 = vmatpush.bf16.msra.mxu0 0
        %892 = vmatpush.bf16.msra.mxu0 0
        %893 = vmatpush.bf16.msra.mxu0 0
        %894 = vmatpush.bf16.msra.mxu0 %v679
        %895 = vmatpush.bf16.msra.mxu0 %v671
        %896 = vmatmul.bf16.gmra.mxu0 %v761
        %v897 = vpop.f32.mrf.mxu0
        %v898 = vadd.f32 %v702, %v897
        %v899 = vpop.f32.mrf.mxu0
        %v900 = vadd.f32 %v707, %v899
        %901 = vmatmul.bf16.gmra.mxu0 %v764
        %v902 = vpop.f32.mrf.mxu0
        %v903 = vadd.f32 %v712, %v902
        %v904 = vpop.f32.mrf.mxu0
        %v905 = vadd.f32 %v717, %v904
        %906 = vmatmul.bf16.gmra.mxu0 %v767
        %v907 = vpop.f32.mrf.mxu0
        %v908 = vadd.f32 %v722, %v907
        %v909 = vpop.f32.mrf.mxu0
        %v910 = vadd.f32 %v727, %v909
        %911 = vmatmul.bf16.gmra.mxu0 %v770
        %v912 = vpop.f32.mrf.mxu0
        %v913 = vadd.f32 %v732, %v912
        %v914 = vpop.f32.mrf.mxu0
        %v915 = vadd.f32 %v737, %v914
        %916 = vdwg.mxu0
        %917 = vmatpush.bf16.msra.mxu0 0
        %918 = vmatpush.bf16.msra.mxu0 0
        %919 = vmatpush.bf16.msra.mxu0 0
        %920 = vmatpush.bf16.msra.mxu0 0
        %921 = vmatpush.bf16.msra.mxu0 0
        %922 = vmatpush.bf16.msra.mxu0 0
        %923 = vmatpush.bf16.msra.mxu0 %v680
        %924 = vmatpush.bf16.msra.mxu0 %v672
        %925 = vmatmul.bf16.gmra.mxu0 %v761
        %v926 = vpop.f32.mrf.mxu0
        %v927 = vadd.f32 %v702, %v926
        %v928 = vpop.f32.mrf.mxu0
        %v929 = vadd.f32 %v707, %v928
        %930 = vmatmul.bf16.gmra.mxu0 %v764
        %v931 = vpop.f32.mrf.mxu0
        %v932 = vadd.f32 %v712, %v931
        %v933 = vpop.f32.mrf.mxu0
        %v934 = vadd.f32 %v717, %v933
        %935 = vmatmul.bf16.gmra.mxu0 %v767
        %v936 = vpop.f32.mrf.mxu0
        %v937 = vadd.f32 %v722, %v936
        %v938 = vpop.f32.mrf.mxu0
        %v939 = vadd.f32 %v727, %v938
        %940 = vmatmul.bf16.gmra.mxu0 %v770
        %v941 = vpop.f32.mrf.mxu0
        %v942 = vadd.f32 %v732, %v941
        %v943 = vpop.f32.mrf.mxu0
        %v944 = vadd.f32 %v737, %v943
        %945 = vdwg.mxu0
        %946 = vmatpush.bf16.msra.mxu0 0
        %947 = vmatpush.bf16.msra.mxu0 0
        %948 = vmatpush.bf16.msra.mxu0 0
        %949 = vmatpush.bf16.msra.mxu0 0
        %950 = vmatpush.bf16.msra.mxu0 0
        %951 = vmatpush.bf16.msra.mxu0 0
        %952 = vmatpush.bf16.msra.mxu0 %v681
        %953 = vmatpush.bf16.msra.mxu0 %v673
        %954 = vmatmul.bf16.gmra.mxu0 %v761
        %v955 = vpop.f32.mrf.mxu0
        %v956 = vadd.f32 %v702, %v955
        %v957 = vpop.f32.mrf.mxu0
        %v958 = vadd.f32 %v707, %v957
        %959 = vmatmul.bf16.gmra.mxu0 %v764
        %v960 = vpop.f32.mrf.mxu0
        %v961 = vadd.f32 %v712, %v960
        %v962 = vpop.f32.mrf.mxu0
        %v963 = vadd.f32 %v717, %v962
        %964 = vmatmul.bf16.gmra.mxu0 %v767
        %v965 = vpop.f32.mrf.mxu0
        %v966 = vadd.f32 %v722, %v965
        %v967 = vpop.f32.mrf.mxu0
        %v968 = vadd.f32 %v727, %v967
        %969 = vmatmul.bf16.gmra.mxu0 %v770
        %v970 = vpop.f32.mrf.mxu0
        %v971 = vadd.f32 %v732, %v970
        %v972 = vpop.f32.mrf.mxu0
        %v973 = vadd.f32 %v737, %v972
        %974 = vdwg.mxu0
        %975 = vmatpush.bf16.msra.mxu0 0
        %976 = vmatpush.bf16.msra.mxu0 0
        %977 = vmatpush.bf16.msra.mxu0 0
        %978 = vmatpush.bf16.msra.mxu0 0
        %979 = vmatpush.bf16.msra.mxu0 0
        %980 = vmatpush.bf16.msra.mxu0 0
        %981 = vmatpush.bf16.msra.mxu0 %v682
        %982 = vmatpush.bf16.msra.mxu0 %v674
        %983 = vmatmul.bf16.gmra.mxu0 %v761
        %v984 = vpop.f32.mrf.mxu0
        %v985 = vadd.f32 %v702, %v984
        %v986 = vpop.f32.mrf.mxu0
        %v987 = vadd.f32 %v707, %v986
        %988 = vmatmul.bf16.gmra.mxu0 %v764
        %v989 = vpop.f32.mrf.mxu0
        %v990 = vadd.f32 %v712, %v989
        %v991 = vpop.f32.mrf.mxu0
        %v992 = vadd.f32 %v717, %v991
        %993 = vmatmul.bf16.gmra.mxu0 %v767
        %v994 = vpop.f32.mrf.mxu0
        %v995 = vadd.f32 %v722, %v994
        %v996 = vpop.f32.mrf.mxu0
        %v997 = vadd.f32 %v727, %v996
        %998 = vmatmul.bf16.gmra.mxu0 %v770
        %v999 = vpop.f32.mrf.mxu0
        %v1000 = vadd.f32 %v732, %v999
        %v1001 = vpop.f32.mrf.mxu0
        %v1002 = vadd.f32 %v737, %v1001
        %1003 = vdwg.mxu0
        %v1004 = vmax.f32 %v782, 0.0
        %v1005 = vmax.f32 %v811, 0.0
        %v1006 = vmax.f32 %v840, 0.0
        %v1007 = vmax.f32 %v869, 0.0
        %v1008 = vmax.f32 %v898, 0.0
        %v1009 = vmax.f32 %v927, 0.0
        %v1010 = vmax.f32 %v956, 0.0
        %v1011 = vmax.f32 %v985, 0.0
        %v1012 = vmax.f32 %v784, 0.0
        %v1013 = vmax.f32 %v813, 0.0
        %v1014 = vmax.f32 %v842, 0.0
        %v1015 = vmax.f32 %v871, 0.0
        %v1016 = vmax.f32 %v900, 0.0
        %v1017 = vmax.f32 %v929, 0.0
        %v1018 = vmax.f32 %v958, 0.0
        %v1019 = vmax.f32 %v987, 0.0
        %v1020 = vmax.f32 %v787, 0.0
        %v1021 = vmax.f32 %v816, 0.0
        %v1022 = vmax.f32 %v845, 0.0
        %v1023 = vmax.f32 %v874, 0.0
        %v1024 = vmax.f32 %v903, 0.0
        %v1025 = vmax.f32 %v932, 0.0
        %v1026 = vmax.f32 %v961, 0.0
        %v1027 = vmax.f32 %v990, 0.0
        %v1028 = vmax.f32 %v789, 0.0
        %v1029 = vmax.f32 %v818, 0.0
        %v1030 = vmax.f32 %v847, 0.0
        %v1031 = vmax.f32 %v876, 0.0
        %v1032 = vmax.f32 %v905, 0.0
        %v1033 = vmax.f32 %v934, 0.0
        %v1034 = vmax.f32 %v963, 0.0
        %v1035 = vmax.f32 %v992, 0.0
        %v1036 = vmax.f32 %v792, 0.0
        %v1037 = vmax.f32 %v821, 0.0
        %v1038 = vmax.f32 %v850, 0.0
        %v1039 = vmax.f32 %v879, 0.0
        %v1040 = vmax.f32 %v908, 0.0
        %v1041 = vmax.f32 %v937, 0.0
        %v1042 = vmax.f32 %v966, 0.0
        %v1043 = vmax.f32 %v995, 0.0
        %v1044 = vmax.f32 %v794, 0.0
        %v1045 = vmax.f32 %v823, 0.0
        %v1046 = vmax.f32 %v852, 0.0
        %v1047 = vmax.f32 %v881, 0.0
        %v1048 = vmax.f32 %v910, 0.0
        %v1049 = vmax.f32 %v939, 0.0
        %v1050 = vmax.f32 %v968, 0.0
        %v1051 = vmax.f32 %v997, 0.0
        %v1052 = vmax.f32 %v797, 0.0
        %v1053 = vmax.f32 %v826, 0.0
        %v1054 = vmax.f32 %v855, 0.0
        %v1055 = vmax.f32 %v884, 0.0
        %v1056 = vmax.f32 %v913, 0.0
        %v1057 = vmax.f32 %v942, 0.0
        %v1058 = vmax.f32 %v971, 0.0
        %v1059 = vmax.f32 %v1000, 0.0
        %v1060 = vmax.f32 %v799, 0.0
        %v1061 = vmax.f32 %v828, 0.0
        %v1062 = vmax.f32 %v857, 0.0
        %v1063 = vmax.f32 %v886, 0.0
        %v1064 = vmax.f32 %v915, 0.0
        %v1065 = vmax.f32 %v944, 0.0
        %v1066 = vmax.f32 %v973, 0.0
        %v1067 = vmax.f32 %v1002, 0.0
        %v1068 = vpack.c.bf16 %v1012, %v1004
        %v1069 = vpack.c.bf16 %v1013, %v1005
        %v1070 = vpack.c.bf16 %v1014, %v1006
        %v1071 = vpack.c.bf16 %v1015, %v1007
        %v1072 = vpack.c.bf16 %v1016, %v1008
        %v1073 = vpack.c.bf16 %v1017, %v1009
        %v1074 = vpack.c.bf16 %v1018, %v1010
        %v1075 = vpack.c.bf16 %v1019, %v1011
        %v1076 = vpack.c.bf16 %v1028, %v1020
        %v1077 = vpack.c.bf16 %v1029, %v1021
        %v1078 = vpack.c.bf16 %v1030, %v1022
        %v1079 = vpack.c.bf16 %v1031, %v1023
        %v1080 = vpack.c.bf16 %v1032, %v1024
        %v1081 = vpack.c.bf16 %v1033, %v1025
        %v1082 = vpack.c.bf16 %v1034, %v1026
        %v1083 = vpack.c.bf16 %v1035, %v1027
        %v1084 = vpack.c.bf16 %v1044, %v1036
        %v1085 = vpack.c.bf16 %v1045, %v1037
        %v1086 = vpack.c.bf16 %v1046, %v1038
        %v1087 = vpack.c.bf16 %v1047, %v1039
        %v1088 = vpack.c.bf16 %v1048, %v1040
        %v1089 = vpack.c.bf16 %v1049, %v1041
        %v1090 = vpack.c.bf16 %v1050, %v1042
        %v1091 = vpack.c.bf16 %v1051, %v1043
        %v1092 = vpack.c.bf16 %v1060, %v1052
        %v1093 = vpack.c.bf16 %v1061, %v1053
        %v1094 = vpack.c.bf16 %v1062, %v1054
        %v1095 = vpack.c.bf16 %v1063, %v1055
        %v1096 = vpack.c.bf16 %v1064, %v1056
        %v1097 = vpack.c.bf16 %v1065, %v1057
        %v1098 = vpack.c.bf16 %v1066, %v1058
        %v1099 = vpack.c.bf16 %v1067, %v1059
        %v1100 = vld [vmem:[%s3] sm:$0xf]
        %v1101 = vld [vmem:[%s3 + $0x4] sm:$0xf]
        %v1102 = vld [vmem:[%s3 + $0x8] sm:$0xf]
        %v1103 = vld [vmem:[%s3 + $0xc] sm:$0xf]
        %v1104 = vld [vmem:[%s4] sm:$0xff]
        %v1105 = vld [vmem:[%s4 + $0x8] sm:$0xff]
        %v1106 = vld [vmem:[%s4 + $0x10] sm:$0xff]
        %v1107 = vld [vmem:[%s4 + $0x18] sm:$0xff]
        %1109 = vset.pattern.permute.xlu0 0
        %1110 = vperm.xlu0 %1109, %v1104
        %v1111 = vpop.permute.xlu0 %1110
        %1114 = vset.pattern.permute.xlu0 0
        %1115 = vperm.xlu0 %1114, %v1105
        %v1116 = vpop.permute.xlu0 %1115
        %1119 = vset.pattern.permute.xlu0 0
        %1120 = vperm.xlu0 %1119, %v1106
        %v1121 = vpop.permute.xlu0 %1120
        %1124 = vset.pattern.permute.xlu0 0
        %1125 = vperm.xlu0 %1124, %v1107
        %v1126 = vpop.permute.xlu0 %1125
        %v1132 = vunpack.c.l.b16 %v1100
        %v1133 = vunpack.c.l.b16 %v1101
        %v1134 = vunpack.c.l.b16 %v1102
        %v1135 = vunpack.c.l.b16 %v1103
        %v1136 = vpack.c.b16 %v1133, %v1132
        %v1137 = vpack.c.b16 %v1135, %v1134
        %vm1138 = vcmask 523264
        %v1140 = vsel %vm1138, %v1136, 0
        %v1143 = vsel %vm1138, %v1137, 0
        %1145 = vmatpush.bf16.msra.mxu0 0
        %1146 = vmatpush.bf16.msra.mxu0 0
        %1147 = vmatpush.bf16.msra.mxu0 0
        %1148 = vmatpush.bf16.msra.mxu0 0
        %1149 = vmatpush.bf16.msra.mxu0 %v1092
        %1150 = vmatpush.bf16.msra.mxu0 %v1084
        %1151 = vmatpush.bf16.msra.mxu0 %v1076
        %1152 = vmatpush.bf16.msra.mxu0 %v1068
        %1153 = vmatmul.bf16.gmra.mxu0 %v1140
        %v1154 = vpop.f32.mrf.mxu0
        %v1155 = vadd.f32 %v1111, %v1154
        %v1156 = vpop.f32.mrf.mxu0
        %v1157 = vadd.f32 %v1116, %v1156
        %1158 = vmatmul.bf16.gmra.mxu0 %v1143
        %v1159 = vpop.f32.mrf.mxu0
        %v1160 = vadd.f32 %v1121, %v1159
        %v1161 = vpop.f32.mrf.mxu0
        %v1162 = vadd.f32 %v1126, %v1161
        %1163 = vdwg.mxu0
        %1164 = vmatpush.bf16.msra.mxu0 0
        %1165 = vmatpush.bf16.msra.mxu0 0
        %1166 = vmatpush.bf16.msra.mxu0 0
        %1167 = vmatpush.bf16.msra.mxu0 0
        %1168 = vmatpush.bf16.msra.mxu0 %v1093
        %1169 = vmatpush.bf16.msra.mxu0 %v1085
        %1170 = vmatpush.bf16.msra.mxu0 %v1077
        %1171 = vmatpush.bf16.msra.mxu0 %v1069
        %1172 = vmatmul.bf16.gmra.mxu0 %v1140
        %v1173 = vpop.f32.mrf.mxu0
        %v1174 = vadd.f32 %v1111, %v1173
        %v1175 = vpop.f32.mrf.mxu0
        %v1176 = vadd.f32 %v1116, %v1175
        %1177 = vmatmul.bf16.gmra.mxu0 %v1143
        %v1178 = vpop.f32.mrf.mxu0
        %v1179 = vadd.f32 %v1121, %v1178
        %v1180 = vpop.f32.mrf.mxu0
        %v1181 = vadd.f32 %v1126, %v1180
        %1182 = vdwg.mxu0
        %1183 = vmatpush.bf16.msra.mxu0 0
        %1184 = vmatpush.bf16.msra.mxu0 0
        %1185 = vmatpush.bf16.msra.mxu0 0
        %1186 = vmatpush.bf16.msra.mxu0 0
        %1187 = vmatpush.bf16.msra.mxu0 %v1094
        %1188 = vmatpush.bf16.msra.mxu0 %v1086
        %1189 = vmatpush.bf16.msra.mxu0 %v1078
        %1190 = vmatpush.bf16.msra.mxu0 %v1070
        %1191 = vmatmul.bf16.gmra.mxu0 %v1140
        %v1192 = vpop.f32.mrf.mxu0
        %v1193 = vadd.f32 %v1111, %v1192
        %v1194 = vpop.f32.mrf.mxu0
        %v1195 = vadd.f32 %v1116, %v1194
        %1196 = vmatmul.bf16.gmra.mxu0 %v1143
        %v1197 = vpop.f32.mrf.mxu0
        %v1198 = vadd.f32 %v1121, %v1197
        %v1199 = vpop.f32.mrf.mxu0
        %v1200 = vadd.f32 %v1126, %v1199
        %1201 = vdwg.mxu0
        %1202 = vmatpush.bf16.msra.mxu0 0
        %1203 = vmatpush.bf16.msra.mxu0 0
        %1204 = vmatpush.bf16.msra.mxu0 0
        %1205 = vmatpush.bf16.msra.mxu0 0
        %1206 = vmatpush.bf16.msra.mxu0 %v1095
        %1207 = vmatpush.bf16.msra.mxu0 %v1087
        %1208 = vmatpush.bf16.msra.mxu0 %v1079
        %1209 = vmatpush.bf16.msra.mxu0 %v1071
        %1210 = vmatmul.bf16.gmra.mxu0 %v1140
        %v1211 = vpop.f32.mrf.mxu0
        %v1212 = vadd.f32 %v1111, %v1211
        %v1213 = vpop.f32.mrf.mxu0
        %v1214 = vadd.f32 %v1116, %v1213
        %1215 = vmatmul.bf16.gmra.mxu0 %v1143
        %v1216 = vpop.f32.mrf.mxu0
        %v1217 = vadd.f32 %v1121, %v1216
        %v1218 = vpop.f32.mrf.mxu0
        %v1219 = vadd.f32 %v1126, %v1218
        %1220 = vdwg.mxu0
        %1221 = vmatpush.bf16.msra.mxu0 0
        %1222 = vmatpush.bf16.msra.mxu0 0
        %1223 = vmatpush.bf16.msra.mxu0 0
        %1224 = vmatpush.bf16.msra.mxu0 0
        %1225 = vmatpush.bf16.msra.mxu0 %v1096
        %1226 = vmatpush.bf16.msra.mxu0 %v1088
        %1227 = vmatpush.bf16.msra.mxu0 %v1080
        %1228 = vmatpush.bf16.msra.mxu0 %v1072
        %1229 = vmatmul.bf16.gmra.mxu0 %v1140
        %v1230 = vpop.f32.mrf.mxu0
        %v1231 = vadd.f32 %v1111, %v1230
        %v1232 = vpop.f32.mrf.mxu0
        %v1233 = vadd.f32 %v1116, %v1232
        %1234 = vmatmul.bf16.gmra.mxu0 %v1143
        %v1235 = vpop.f32.mrf.mxu0
        %v1236 = vadd.f32 %v1121, %v1235
        %v1237 = vpop.f32.mrf.mxu0
        %v1238 = vadd.f32 %v1126, %v1237
        %1239 = vdwg.mxu0
        %1240 = vmatpush.bf16.msra.mxu0 0
        %1241 = vmatpush.bf16.msra.mxu0 0
        %1242 = vmatpush.bf16.msra.mxu0 0
        %1243 = vmatpush.bf16.msra.mxu0 0
        %1244 = vmatpush.bf16.msra.mxu0 %v1097
        %1245 = vmatpush.bf16.msra.mxu0 %v1089
        %1246 = vmatpush.bf16.msra.mxu0 %v1081
        %1247 = vmatpush.bf16.msra.mxu0 %v1073
        %1248 = vmatmul.bf16.gmra.mxu0 %v1140
        %v1249 = vpop.f32.mrf.mxu0
        %v1250 = vadd.f32 %v1111, %v1249
        %v1251 = vpop.f32.mrf.mxu0
        %v1252 = vadd.f32 %v1116, %v1251
        %1253 = vmatmul.bf16.gmra.mxu0 %v1143
        %v1254 = vpop.f32.mrf.mxu0
        %v1255 = vadd.f32 %v1121, %v1254
        %v1256 = vpop.f32.mrf.mxu0
        %v1257 = vadd.f32 %v1126, %v1256
        %1258 = vdwg.mxu0
        %1259 = vmatpush.bf16.msra.mxu0 0
        %1260 = vmatpush.bf16.msra.mxu0 0
        %1261 = vmatpush.bf16.msra.mxu0 0
        %1262 = vmatpush.bf16.msra.mxu0 0
        %1263 = vmatpush.bf16.msra.mxu0 %v1098
        %1264 = vmatpush.bf16.msra.mxu0 %v1090
        %1265 = vmatpush.bf16.msra.mxu0 %v1082
        %1266 = vmatpush.bf16.msra.mxu0 %v1074
        %1267 = vmatmul.bf16.gmra.mxu0 %v1140
        %v1268 = vpop.f32.mrf.mxu0
        %v1269 = vadd.f32 %v1111, %v1268
        %v1270 = vpop.f32.mrf.mxu0
        %v1271 = vadd.f32 %v1116, %v1270
        %1272 = vmatmul.bf16.gmra.mxu0 %v1143
        %v1273 = vpop.f32.mrf.mxu0
        %v1274 = vadd.f32 %v1121, %v1273
        %v1275 = vpop.f32.mrf.mxu0
        %v1276 = vadd.f32 %v1126, %v1275
        %1277 = vdwg.mxu0
        %1278 = vmatpush.bf16.msra.mxu0 0
        %1279 = vmatpush.bf16.msra.mxu0 0
        %1280 = vmatpush.bf16.msra.mxu0 0
        %1281 = vmatpush.bf16.msra.mxu0 0
        %1282 = vmatpush.bf16.msra.mxu0 %v1099
        %1283 = vmatpush.bf16.msra.mxu0 %v1091
        %1284 = vmatpush.bf16.msra.mxu0 %v1083
        %1285 = vmatpush.bf16.msra.mxu0 %v1075
        %1286 = vmatmul.bf16.gmra.mxu0 %v1140
        %v1287 = vpop.f32.mrf.mxu0
        %v1288 = vadd.f32 %v1111, %v1287
        %v1289 = vpop.f32.mrf.mxu0
        %v1290 = vadd.f32 %v1116, %v1289
        %1291 = vmatmul.bf16.gmra.mxu0 %v1143
        %v1292 = vpop.f32.mrf.mxu0
        %v1293 = vadd.f32 %v1121, %v1292
        %v1294 = vpop.f32.mrf.mxu0
        %v1295 = vadd.f32 %v1126, %v1294
        %1296 = vdwg.mxu0
        %v1297 = vmax.f32 %v1155, 0.0
        %v1298 = vmax.f32 %v1174, 0.0
        %v1299 = vmax.f32 %v1193, 0.0
        %v1300 = vmax.f32 %v1212, 0.0
        %v1301 = vmax.f32 %v1231, 0.0
        %v1302 = vmax.f32 %v1250, 0.0
        %v1303 = vmax.f32 %v1269, 0.0
        %v1304 = vmax.f32 %v1288, 0.0
        %v1305 = vmax.f32 %v1157, 0.0
        %v1306 = vmax.f32 %v1176, 0.0
        %v1307 = vmax.f32 %v1195, 0.0
        %v1308 = vmax.f32 %v1214, 0.0
        %v1309 = vmax.f32 %v1233, 0.0
        %v1310 = vmax.f32 %v1252, 0.0
        %v1311 = vmax.f32 %v1271, 0.0
        %v1312 = vmax.f32 %v1290, 0.0
        %v1313 = vmax.f32 %v1160, 0.0
        %v1314 = vmax.f32 %v1179, 0.0
        %v1315 = vmax.f32 %v1198, 0.0
        %v1316 = vmax.f32 %v1217, 0.0
        %v1317 = vmax.f32 %v1236, 0.0
        %v1318 = vmax.f32 %v1255, 0.0
        %v1319 = vmax.f32 %v1274, 0.0
        %v1320 = vmax.f32 %v1293, 0.0
        %v1321 = vmax.f32 %v1162, 0.0
        %v1322 = vmax.f32 %v1181, 0.0
        %v1323 = vmax.f32 %v1200, 0.0
        %v1324 = vmax.f32 %v1219, 0.0
        %v1325 = vmax.f32 %v1238, 0.0
        %v1326 = vmax.f32 %v1257, 0.0
        %v1327 = vmax.f32 %v1276, 0.0
        %v1328 = vmax.f32 %v1295, 0.0
        %v1329 = vld [vmem:[%s5] sm:$0xff]
        %v1330 = vld [vmem:[%s5 + $0x8] sm:$0xff]
        %v1331 = vld [vmem:[%s5 + $0x10] sm:$0xff]
        %v1332 = vld [vmem:[%s5 + $0x18] sm:$0xff]
        %1334 = vset.pattern.permute.xlu0 0
        %1335 = vperm.xlu0 %1334, %v1329
        %v1336 = vpop.permute.xlu0 %1335
        %1339 = vset.pattern.permute.xlu0 0
        %1340 = vperm.xlu0 %1339, %v1330
        %v1341 = vpop.permute.xlu0 %1340
        %1344 = vset.pattern.permute.xlu0 0
        %1345 = vperm.xlu0 %1344, %v1331
        %v1346 = vpop.permute.xlu0 %1345
        %1349 = vset.pattern.permute.xlu0 0
        %1350 = vperm.xlu0 %1349, %v1332
        %v1351 = vpop.permute.xlu0 %1350
        %v1353 = vmul.f32 %v1297, %v1336
        %v1354 = vmul.f32 %v1298, %v1336
        %v1355 = vmul.f32 %v1299, %v1336
        %v1356 = vmul.f32 %v1300, %v1336
        %v1357 = vmul.f32 %v1301, %v1336
        %v1358 = vmul.f32 %v1302, %v1336
        %v1359 = vmul.f32 %v1303, %v1336
        %v1360 = vmul.f32 %v1304, %v1336
        %v1361 = vmul.f32 %v1305, %v1341
        %v1362 = vmul.f32 %v1306, %v1341
        %v1363 = vmul.f32 %v1307, %v1341
        %v1364 = vmul.f32 %v1308, %v1341
        %v1365 = vmul.f32 %v1309, %v1341
        %v1366 = vmul.f32 %v1310, %v1341
        %v1367 = vmul.f32 %v1311, %v1341
        %v1368 = vmul.f32 %v1312, %v1341
        %v1369 = vmul.f32 %v1313, %v1346
        %v1370 = vmul.f32 %v1314, %v1346
        %v1371 = vmul.f32 %v1315, %v1346
        %v1372 = vmul.f32 %v1316, %v1346
        %v1373 = vmul.f32 %v1317, %v1346
        %v1374 = vmul.f32 %v1318, %v1346
        %v1375 = vmul.f32 %v1319, %v1346
        %v1376 = vmul.f32 %v1320, %v1346
        %v1377 = vmul.f32 %v1321, %v1351
        %v1378 = vmul.f32 %v1322, %v1351
        %v1379 = vmul.f32 %v1323, %v1351
        %v1380 = vmul.f32 %v1324, %v1351
        %v1381 = vmul.f32 %v1325, %v1351
        %v1382 = vmul.f32 %v1326, %v1351
        %v1383 = vmul.f32 %v1327, %v1351
        %v1384 = vmul.f32 %v1328, %v1351
        %v1385 = vadd.f32 %v1353, %v1361
        %v1386 = vadd.f32 %v1385, %v1369
        %v1387 = vadd.f32 %v1386, %v1377
        %v1388 = vrot.slane %v1387, 4
        %v1389 = vadd.f32 %v1387, %v1388
        %v1390 = vrot.slane %v1389, 2
        %v1391 = vadd.f32 %v1389, %v1390
        %v1392 = vrot.slane %v1391, 1
        %v1393 = vadd.f32 %v1391, %v1392
        %v1394 = vadd.f32 %v1354, %v1362
        %v1395 = vadd.f32 %v1394, %v1370
        %v1396 = vadd.f32 %v1395, %v1378
        %v1397 = vrot.slane %v1396, 4
        %v1398 = vadd.f32 %v1396, %v1397
        %v1399 = vrot.slane %v1398, 2
        %v1400 = vadd.f32 %v1398, %v1399
        %v1401 = vrot.slane %v1400, 1
        %v1402 = vadd.f32 %v1400, %v1401
        %v1403 = vadd.f32 %v1355, %v1363
        %v1404 = vadd.f32 %v1403, %v1371
        %v1405 = vadd.f32 %v1404, %v1379
        %v1406 = vrot.slane %v1405, 4
        %v1407 = vadd.f32 %v1405, %v1406
        %v1408 = vrot.slane %v1407, 2
        %v1409 = vadd.f32 %v1407, %v1408
        %v1410 = vrot.slane %v1409, 1
        %v1411 = vadd.f32 %v1409, %v1410
        %v1412 = vadd.f32 %v1356, %v1364
        %v1413 = vadd.f32 %v1412, %v1372
        %v1414 = vadd.f32 %v1413, %v1380
        %v1415 = vrot.slane %v1414, 4
        %v1416 = vadd.f32 %v1414, %v1415
        %v1417 = vrot.slane %v1416, 2
        %v1418 = vadd.f32 %v1416, %v1417
        %v1419 = vrot.slane %v1418, 1
        %v1420 = vadd.f32 %v1418, %v1419
        %v1421 = vadd.f32 %v1357, %v1365
        %v1422 = vadd.f32 %v1421, %v1373
        %v1423 = vadd.f32 %v1422, %v1381
        %v1424 = vrot.slane %v1423, 4
        %v1425 = vadd.f32 %v1423, %v1424
        %v1426 = vrot.slane %v1425, 2
        %v1427 = vadd.f32 %v1425, %v1426
        %v1428 = vrot.slane %v1427, 1
        %v1429 = vadd.f32 %v1427, %v1428
        %v1430 = vadd.f32 %v1358, %v1366
        %v1431 = vadd.f32 %v1430, %v1374
        %v1432 = vadd.f32 %v1431, %v1382
        %v1433 = vrot.slane %v1432, 4
        %v1434 = vadd.f32 %v1432, %v1433
        %v1435 = vrot.slane %v1434, 2
        %v1436 = vadd.f32 %v1434, %v1435
        %v1437 = vrot.slane %v1436, 1
        %v1438 = vadd.f32 %v1436, %v1437
        %v1439 = vadd.f32 %v1359, %v1367
        %v1440 = vadd.f32 %v1439, %v1375
        %v1441 = vadd.f32 %v1440, %v1383
        %v1442 = vrot.slane %v1441, 4
        %v1443 = vadd.f32 %v1441, %v1442
        %v1444 = vrot.slane %v1443, 2
        %v1445 = vadd.f32 %v1443, %v1444
        %v1446 = vrot.slane %v1445, 1
        %v1447 = vadd.f32 %v1445, %v1446
        %v1448 = vadd.f32 %v1360, %v1368
        %v1449 = vadd.f32 %v1448, %v1376
        %v1450 = vadd.f32 %v1449, %v1384
        %v1451 = vrot.slane %v1450, 4
        %v1452 = vadd.f32 %v1450, %v1451
        %v1453 = vrot.slane %v1452, 2
        %v1454 = vadd.f32 %v1452, %v1453
        %v1455 = vrot.slane %v1454, 1
        %v1456 = vadd.f32 %v1454, %v1455
        %v1457 = vld [vmem:[#allocation2] sm:$0x1]
        %1459 = vset.pattern.permute.xlu0 0
        %1460 = vperm.xlu0 %1459, %v1457
        %v1461 = vpop.permute.xlu0 %1460
        %v1463 = vperm.slane %v1461, 0
        %v1464 = vadd.f32 %v1393, %v1463
        %v1465 = vadd.f32 %v1402, %v1463
        %v1466 = vadd.f32 %v1411, %v1463
        %v1467 = vadd.f32 %v1420, %v1463
        %v1468 = vadd.f32 %v1429, %v1463
        %v1469 = vadd.f32 %v1438, %v1463
        %v1470 = vadd.f32 %v1447, %v1463
        %v1471 = vadd.f32 %v1456, %v1463
        %v1472 = vand.u32 2147483647, %v1464
        %v1473 = vand.u32 2147483647, %v1465
        %v1474 = vand.u32 2147483647, %v1466
        %v1475 = vand.u32 2147483647, %v1467
        %v1476 = vand.u32 2147483647, %v1468
        %v1477 = vand.u32 2147483647, %v1469
        %v1478 = vand.u32 2147483647, %v1470
        %v1479 = vand.u32 2147483647, %v1471
        %v1480 = vsub.f32 0.0, %v1472
        %v1481 = vsub.f32 0.0, %v1473
        %v1482 = vsub.f32 0.0, %v1474
        %v1483 = vsub.f32 0.0, %v1475
        %v1484 = vsub.f32 0.0, %v1476
        %v1485 = vsub.f32 0.0, %v1477
        %v1486 = vsub.f32 0.0, %v1478
        %v1487 = vsub.f32 0.0, %v1479
        %v1488 = vmul.f32 %v1480, 1.442695
        %v1489 = vpow.pop %v1488
        %v1490 = vmul.f32 %v1481, 1.442695
        %v1491 = vpow.pop %v1490
        %v1492 = vmul.f32 %v1482, 1.442695
        %v1493 = vpow.pop %v1492
        %v1494 = vmul.f32 %v1483, 1.442695
        %v1495 = vpow.pop %v1494
        %v1496 = vmul.f32 %v1484, 1.442695
        %v1497 = vpow.pop %v1496
        %v1498 = vmul.f32 %v1485, 1.442695
        %v1499 = vpow.pop %v1498
        %v1500 = vmul.f32 %v1486, 1.442695
        %v1501 = vpow.pop %v1500
        %v1502 = vmul.f32 %v1487, 1.442695
        %v1503 = vpow.pop %v1502
        %v1504 = vadd.f32 %v1489, 1.0
        %v1505 = vadd.f32 %v1491, 1.0
        %v1506 = vadd.f32 %v1493, 1.0
        %v1507 = vadd.f32 %v1495, 1.0
        %v1508 = vadd.f32 %v1497, 1.0
        %v1509 = vadd.f32 %v1499, 1.0
        %v1510 = vadd.f32 %v1501, 1.0
        %v1511 = vadd.f32 %v1503, 1.0
        %v1512 = vrcp.pop %v1504
        %v1513 = vrcp.pop %v1505
        %v1514 = vrcp.pop %v1506
        %v1515 = vrcp.pop %v1507
        %v1516 = vrcp.pop %v1508
        %v1517 = vrcp.pop %v1509
        %v1518 = vrcp.pop %v1510
        %v1519 = vrcp.pop %v1511
        %vm1520 = vcmp.ge.f32.partialorder %v1464, 0.0
        %vm1521 = vcmp.ge.f32.partialorder %v1465, 0.0
        %vm1522 = vcmp.ge.f32.partialorder %v1466, 0.0
        %vm1523 = vcmp.ge.f32.partialorder %v1467, 0.0
        %vm1524 = vcmp.ge.f32.partialorder %v1468, 0.0
        %vm1525 = vcmp.ge.f32.partialorder %v1469, 0.0
        %vm1526 = vcmp.ge.f32.partialorder %v1470, 0.0
        %vm1527 = vcmp.ge.f32.partialorder %v1471, 0.0
        %v1528 = vmul.f32 %v1489, %v1512
        %v1529 = vmul.f32 %v1491, %v1513
        %v1530 = vmul.f32 %v1493, %v1514
        %v1531 = vmul.f32 %v1495, %v1515
        %v1532 = vmul.f32 %v1497, %v1516
        %v1533 = vmul.f32 %v1499, %v1517
        %v1534 = vmul.f32 %v1501, %v1518
        %v1535 = vmul.f32 %v1503, %v1519
        %v1536 = vsel %vm1520, %v1512, %v1528
        %v1537 = vsel %vm1521, %v1513, %v1529
        %v1538 = vsel %vm1522, %v1514, %v1530
        %v1539 = vsel %vm1523, %v1515, %v1531
        %v1540 = vsel %vm1524, %v1516, %v1532
        %v1541 = vsel %vm1525, %v1517, %v1533
        %v1542 = vsel %vm1526, %v1518, %v1534
        %v1543 = vsel %vm1527, %v1519, %v1535
        %v1552 = vrot.slane %v1537, 7
        %v1553 = vrot.slane %v1538, 6
        %v1554 = vrot.slane %v1539, 5
        %v1555 = vrot.slane %v1540, 4
        %v1556 = vrot.slane %v1541, 3
        %v1557 = vrot.slane %v1542, 2
        %v1558 = vrot.slane %v1543, 1
        %vm1559 = vcmask 1040384
        %v1560 = vsel %vm1559, %v1536, %v1552
        %vm1561 = vcmask 1042434
        %v1562 = vsel %vm1561, %v1553, %v1554
        %vm1563 = vcmask 1041408
        %v1564 = vsel %vm1563, %v1560, %v1562
        %vm1565 = vcmask 1044484
        %v1566 = vsel %vm1565, %v1555, %v1556
        %vm1567 = vcmask 1046534
        %v1568 = vsel %vm1567, %v1557, %v1558
        %vm1569 = vcmask 1045508
        %v1570 = vsel %vm1569, %v1566, %v1568
        %vm1571 = vcmask 1043456
        %v1572 = vsel %vm1571, %v1564, %v1570
        %1574 = vst [vmem:[%s274] sm:$0xff] %v1572
        %s1575 = sand.u32 %s183, 1
        %s1576 = scalar_lea.sflag [#allocation4], %s1575
        %s1577 = sand.u32 %s183, 1
        %s1578 = smul.addr %s1577, 8
        %s1579 = scalar_lea.vmem [#allocation3], %s1578
        // Predicated region
        $region49: #{tpu_custom_call.1} parent=47 // pred_check
          %p1580 = pneg %p193
        $region50: #{tpu_custom_call.1} parent=47 // pred_check_branch
          %1582 = sbr.rel (%p1580) target = $region52
        $region51: #{tpu_custom_call.1} parent=47 // pred_region
          %s1583 = smul.u32 8, %s23
          %1585 = vsyncadd %s1576, 0
          %s1586 = scalar_lea.hbm %s7, %s1583
          %s1588 = sshll.u32 %s1579, 4
          %s1589 = int_to_ptr.vmem [resolvable:$true] %s1588
          %s1590 = sshll.u32 %s1586, 4
          %s1591 = int_to_ptr.hbm [resolvable:$true] %s1590
          %1593 = dma.vmem_to_hbm [thread:$0]  %s1589, 128, %s1591, %s1576
        $region52: #{tpu_custom_call.1} parent=47 // pred_fallthru
          _
      $region48: #{tpu_custom_call.1} parent=5 // pred_fallthru
        _
      %p1594 = scmp.le.s32.totalorder 2, %s18
      // Predicated region
      $region53: #{tpu_custom_call.1} parent=5 // pred_check
        %p1595 = pneg %p1594
      $region54: #{tpu_custom_call.1} parent=5 // pred_check_branch
        %1597 = sbr.rel (%p1595) target = $region56
      $region55: #{tpu_custom_call.1} parent=5 // pred_region
        %s1598 = ssub.s32 %s18, 2
        // Predicated region
        $region57: #{tpu_custom_call.1} parent=55 // pred_check
          %p1599 = pneg %p199
        $region58: #{tpu_custom_call.1} parent=55 // pred_check_branch
          %1601 = sbr.rel (%p1599) target = $region60
        $region59: #{tpu_custom_call.1} parent=55 // pred_region
          %s1602 = sand.u32 %s184, 1
          %s1603 = scalar_lea.sflag [#allocation4], %s1602
          %s1604 = sand.u32 %s184, 1
          %s1605 = smul.addr %s1604, 8
          %s1606 = scalar_lea.vmem [#allocation3], %s1605
          %1608 = dma.done %s1603, 128
        $region60: #{tpu_custom_call.1} parent=55 // pred_fallthru
          _
      $region56: #{tpu_custom_call.1} parent=5 // pred_fallthru
        _
    $region6: #{tpu_custom_call.1} parent=1 // loop_footer
      %s22 = sadd.s32 1, %s18
    $region7: #{tpu_custom_call.1} parent=1 // loop_footer_branch
      %17 = sbr.rel target = $region3
    $region8: #{tpu_custom_call.1} parent=1 // loop_exit
      _
    %1609 = vsyncpa [#allocation4], 1
    %s1610 = scalar_lea.sflag [#allocation4], 1
    %1611 = vsyncpa %s1610, 1

</llo_original>
